<compile_context>
chip_gen: v6e
topology: v6e:2x2x1
jax: 0.10.0
libtpu: 0.0.40
codegen_flags: <defaults>
</compile_context>

<pallas_src>
import functools

import jax
import jax.numpy as jnp
from jax.experimental import pallas as pl
from jax.experimental.pallas import tpu as pltpu


def _gru_encoder_kernel(T, B, H,
                        x_ref, dt_ref, wx_ref, wt_ref, wh_ref,
                        bpre_ref, bhn_ref, wlat_ref, blat_ref, z0_ref):
    """GRU encoder, one kernel invocation (no grid).

    x_ref    : (T*B, D)  inputs, original time order (row = (t, b))
    dt_ref   : (T*B, 1)  time deltas (dt[0]=0, dt[k]=t[k-1]-t[k])
    wx_ref   : (3, D, H) input->hidden weights (x part), gate order (r, z, n)
    wt_ref   : (3, 1, H) input->hidden weights (dt part)
    wh_ref   : (3, H, H) hidden->hidden weights (transposed per gate)
    bpre_ref : (3, 1, H) biases folded into input projection
                         (r: b_ir+b_hr, z: b_iz+b_hz, n: b_in)
    bhn_ref  : (1, H)    b_hn (must stay inside r * (gh_n + b_hn))
    wlat_ref : (H, 2L)   hid2lat weight (transposed)
    blat_ref : (1, 2L)   hid2lat bias
    z0_ref   : (B, 2L)   output slab = (mu | logvar)
    """
    x2d = x_ref[...]                       # (T*B, D)
    dt2d = dt_ref[...]                     # (T*B, 1)
    wx = wx_ref[...]                       # (3, D, H)
    wt = wt_ref[...]                       # (3, 1, H)
    bpre = bpre_ref[...]                   # (3, 1, H)

    # ---- Hoisted input projection: all timesteps at once, per gate so each
    # result is a lane-dense (T*B, H) tile (no in-lane gate slicing later).
    def input_proj(g):
        return (jnp.dot(x2d, wx[g], preferred_element_type=jnp.float32)
                + dt2d * wt[g] + bpre[g])

    gi_r = input_proj(0)
    gi_z = input_proj(1)
    gi_n = input_proj(2)

    wh_r = wh_ref[0]                       # (H, H)
    wh_z = wh_ref[1]
    wh_n = wh_ref[2]
    bhn = jnp.broadcast_to(bhn_ref[...], (B, H))   # hoisted broadcast

    # ---- Sequential recurrence over the reversed time axis.  Fully unrolled
    # straight-line code (T is small) so the scheduler can overlap the next
    # step's MXU push with the current step's VPU/EUP gate math.
    h = jnp.zeros((B, H), jnp.float32)
    for s in range(T):
        idx = T - 1 - s                    # time flip (xt.flip((0,)))
        lo = idx * B
        gh_r = jnp.dot(h, wh_r, preferred_element_type=jnp.float32)
        gh_z = jnp.dot(h, wh_z, preferred_element_type=jnp.float32)
        gh_n = jnp.dot(h, wh_n, preferred_element_type=jnp.float32)
        r = jax.nn.sigmoid(gi_r[lo:lo + B, :] + gh_r)
        z = jax.nn.sigmoid(gi_z[lo:lo + B, :] + gh_z)
        n = jnp.tanh(gi_n[lo:lo + B, :] + r * (gh_n + bhn))
        h = (1.0 - z) * n + z * h

    # ---- hid2lat fused into the kernel; single (B, 2L) store.
    z0_ref[...] = (jnp.dot(h, wlat_ref[...], preferred_element_type=jnp.float32)
                   + blat_ref[...])


def rnn_encoder_forward(x, t, params):
    """Pallas implementation of RNNEncoder.forward (encoder='gru')."""
    T, B, D = x.shape
    H = params["whh"].shape[1]
    L = params["blat"].shape[0] // 2

    # t[1:] = t[:-1] - t[1:]; t[0] = 0.0  (tiny (T,B,1) tensor; full xt is
    # never materialized in HBM — the concat is replaced by a split Wih).
    dt = jnp.concatenate([jnp.zeros((1, B, 1), x.dtype), t[:-1] - t[1:]], axis=0)
    x2d = x.reshape(T * B, D).astype(jnp.float32)
    dt2d = dt.reshape(T * B, 1).astype(jnp.float32)

    # Per-gate weight split, PyTorch nn.GRU gate order (r, z, n); transposed so
    # every kernel matmul is (rows, K) @ (K, H).
    wih, whh = params["wih"], params["whh"]          # (3H, D+1), (3H, H)
    bih, bhh = params["bih"], params["bhh"]          # (3H,), (3H,)
    gate = lambda w, g: w[g * H:(g + 1) * H]

    wx = jnp.stack([gate(wih, g)[:, :D].T for g in range(3)], axis=0)   # (3, D, H)
    wt = jnp.stack([gate(wih, g)[:, D:].T for g in range(3)], axis=0)   # (3, 1, H)
    wh = jnp.stack([gate(whh, g).T for g in range(3)], axis=0)          # (3, H, H)
    bpre = jnp.stack([
        (gate(bih, 0) + gate(bhh, 0)).reshape(1, H),    # r : b_ir + b_hr
        (gate(bih, 1) + gate(bhh, 1)).reshape(1, H),    # z : b_iz + b_hz
        gate(bih, 2).reshape(1, H),                     # n : b_in only
    ], axis=0)                                                          # (3, 1, H)
    bhn = gate(bhh, 2).reshape(1, H)                                    # (1, H)
    wlat_t = params["wlat"].T                                           # (H, 2L)
    blat = params["blat"].reshape(1, 2 * L)                             # (1, 2L)

    kernel = functools.partial(_gru_encoder_kernel, T, B, H)
    vmem = pl.BlockSpec(memory_space=pltpu.MemorySpace.VMEM)

    z0 = pl.pallas_call(
        kernel,
        out_shape=jax.ShapeDtypeStruct((B, 2 * L), jnp.float32),
        in_specs=[vmem] * 9,
        out_specs=vmem,
    )(x2d, dt2d, wx, wt, wh, bpre, bhn, wlat_t, blat)

    return z0[:, :L], z0[:, L:]


def ref_forward(x, t, params):
    """Pure-JAX reference (mirrors the PyTorch forward) for validation."""
    B = x.shape[1]
    H = params["whh"].shape[1]
    L = params["blat"].shape[0] // 2
    dt = jnp.concatenate([jnp.zeros((1, B, 1), x.dtype), t[:-1] - t[1:]], axis=0)
    xt = jnp.concatenate([x, dt], axis=-1).astype(jnp.float32)[::-1]

    def step(h, x_t):
        gi = x_t @ params["wih"].T + params["bih"]
        gh = h @ params["whh"].T + params["bhh"]
        r = jax.nn.sigmoid(gi[:, :H] + gh[:, :H])
        z = jax.nn.sigmoid(gi[:, H:2 * H] + gh[:, H:2 * H])
        n = jnp.tanh(gi[:, 2 * H:] + r * gh[:, 2 * H:])
        return (1.0 - z) * n + z * h, None

    h0 = jnp.zeros((B, H), jnp.float32)
    hT, _ = jax.lax.scan(step, h0, xt)
    z0 = hT @ params["wlat"].T + params["blat"]
    return z0[:, :L], z0[:, L:]


def init_params(key, input_dim, hidden_dim, latent_dim):
    D1 = input_dim + 1
    k_rnn = 1.0 / jnp.sqrt(hidden_dim)
    k_lin = 1.0 / jnp.sqrt(hidden_dim)
    ks = jax.random.split(key, 6)
    u = lambda k, shape, s: jax.random.uniform(k, shape, jnp.float32, -s, s)
    return {
        "wih": u(ks[0], (3 * hidden_dim, D1), k_rnn),
        "whh": u(ks[1], (3 * hidden_dim, hidden_dim), k_rnn),
        "bih": u(ks[2], (3 * hidden_dim,), k_rnn),
        "bhh": u(ks[3], (3 * hidden_dim,), k_rnn),
        "wlat": u(ks[4], (2 * latent_dim, hidden_dim), k_lin),
        "blat": u(ks[5], (2 * latent_dim,), k_lin),
    }


if __name__ == "__main__":
    T, B = 8, 2
    input_dim, hidden_dim, latent_dim = 4, 32, 8

    key = jax.random.PRNGKey(0)
    k_x, k_t, k_p = jax.random.split(key, 3)
    x = jax.random.normal(k_x, (T, B, input_dim), jnp.float32)
    # monotonically increasing observation times per batch element
    t = jnp.cumsum(jax.random.uniform(k_t, (T, B, 1), jnp.float32, 0.1, 1.0), axis=0)
    params = init_params(k_p, input_dim, hidden_dim, latent_dim)

    mu, logvar = jax.jit(rnn_encoder_forward)(x, t, params)
    jax.block_until_ready((mu, logvar))

    mu_ref, logvar_ref = ref_forward(x, t, params)
    assert mu.shape == (B, latent_dim) and logvar.shape == (B, latent_dim)
    assert jnp.allclose(mu, mu_ref, atol=5e-3, rtol=5e-3)
    assert jnp.allclose(logvar, logvar_ref, atol=5e-3, rtol=5e-3)

    print("KERNEL_OK")
</pallas_src>

<mosaic_0001>
module attributes {stable_mosaic.version = 11 : i64} {
  func.func @_gru_encoder_kernel(%arg0: memref<16x4xf32, #tpu.memory_space<vmem>>, %arg1: memref<16x1xf32, #tpu.memory_space<vmem>>, %arg2: memref<3x4x32xf32, #tpu.memory_space<vmem>>, %arg3: memref<3x1x32xf32, #tpu.memory_space<vmem>>, %arg4: memref<3x32x32xf32, #tpu.memory_space<vmem>>, %arg5: memref<3x1x32xf32, #tpu.memory_space<vmem>>, %arg6: memref<1x32xf32, #tpu.memory_space<vmem>>, %arg7: memref<32x16xf32, #tpu.memory_space<vmem>>, %arg8: memref<1x16xf32, #tpu.memory_space<vmem>>, %arg9: memref<2x16xf32, #tpu.memory_space<vmem>>) attributes {dimension_semantics = [], scalar_prefetch = 0 : i64, scratch_operands = 0 : i64, tpu.core_type = #tpu.core_type<tc>} {
    %c0 = arith.constant 0 : index
    %c0_0 = arith.constant 0 : index
    %0 = vector.load %arg0[%c0, %c0_0] : memref<16x4xf32, #tpu.memory_space<vmem>>, vector<16x4xf32>
    %c0_1 = arith.constant 0 : index
    %c0_2 = arith.constant 0 : index
    %1 = vector.load %arg1[%c0_1, %c0_2] : memref<16x1xf32, #tpu.memory_space<vmem>>, vector<16x1xf32>
    %c0_3 = arith.constant 0 : index
    %c0_4 = arith.constant 0 : index
    %c0_5 = arith.constant 0 : index
    %2 = vector.load %arg2[%c0_3, %c0_4, %c0_5] : memref<3x4x32xf32, #tpu.memory_space<vmem>>, vector<3x4x32xf32>
    %c0_6 = arith.constant 0 : index
    %c0_7 = arith.constant 0 : index
    %c0_8 = arith.constant 0 : index
    %3 = vector.load %arg3[%c0_6, %c0_7, %c0_8] : memref<3x1x32xf32, #tpu.memory_space<vmem>>, vector<3x1x32xf32>
    %c0_9 = arith.constant 0 : index
    %c0_10 = arith.constant 0 : index
    %c0_11 = arith.constant 0 : index
    %4 = vector.load %arg5[%c0_9, %c0_10, %c0_11] : memref<3x1x32xf32, #tpu.memory_space<vmem>>, vector<3x1x32xf32>
    %5 = vector.extract_strided_slice %2 {offsets = [0, 0, 0], sizes = [1, 4, 32], strides = [1, 1, 1]} : vector<3x4x32xf32> to vector<1x4x32xf32>
    %6 = vector.shape_cast %5 : vector<1x4x32xf32> to vector<4x32xf32>
    %cst = arith.constant dense<0.000000e+00> : vector<16x32xf32>
    %7 = tpu.matmul %0, %6, %cst {dimension_numbers = #tpu.dot_dimension_numbers<[1], [0], [0], [1], [0, 0, 1, 1], [], []>} : vector<16x4xf32>, vector<4x32xf32>, vector<16x32xf32> -> vector<16x32xf32>
    %8 = vector.extract_strided_slice %3 {offsets = [0, 0, 0], sizes = [1, 1, 32], strides = [1, 1, 1]} : vector<3x1x32xf32> to vector<1x1x32xf32>
    %9 = vector.shape_cast %8 : vector<1x1x32xf32> to vector<1x32xf32>
    %10 = vector.broadcast %1 : vector<16x1xf32> to vector<16x32xf32>
    %11 = vector.broadcast %9 : vector<1x32xf32> to vector<16x32xf32>
    %12 = arith.mulf %10, %11 : vector<16x32xf32>
    %13 = arith.addf %7, %12 : vector<16x32xf32>
    %14 = vector.extract_strided_slice %4 {offsets = [0, 0, 0], sizes = [1, 1, 32], strides = [1, 1, 1]} : vector<3x1x32xf32> to vector<1x1x32xf32>
    %15 = vector.shape_cast %14 : vector<1x1x32xf32> to vector<1x32xf32>
    %16 = vector.broadcast %15 : vector<1x32xf32> to vector<16x32xf32>
    %17 = arith.addf %13, %16 : vector<16x32xf32>
    %18 = vector.extract_strided_slice %2 {offsets = [1, 0, 0], sizes = [1, 4, 32], strides = [1, 1, 1]} : vector<3x4x32xf32> to vector<1x4x32xf32>
    %19 = vector.shape_cast %18 : vector<1x4x32xf32> to vector<4x32xf32>
    %cst_12 = arith.constant dense<0.000000e+00> : vector<16x32xf32>
    %20 = tpu.matmul %0, %19, %cst_12 {dimension_numbers = #tpu.dot_dimension_numbers<[1], [0], [0], [1], [0, 0, 1, 1], [], []>} : vector<16x4xf32>, vector<4x32xf32>, vector<16x32xf32> -> vector<16x32xf32>
    %21 = vector.extract_strided_slice %3 {offsets = [1, 0, 0], sizes = [1, 1, 32], strides = [1, 1, 1]} : vector<3x1x32xf32> to vector<1x1x32xf32>
    %22 = vector.shape_cast %21 : vector<1x1x32xf32> to vector<1x32xf32>
    %23 = vector.broadcast %1 : vector<16x1xf32> to vector<16x32xf32>
    %24 = vector.broadcast %22 : vector<1x32xf32> to vector<16x32xf32>
    %25 = arith.mulf %23, %24 : vector<16x32xf32>
    %26 = arith.addf %20, %25 : vector<16x32xf32>
    %27 = vector.extract_strided_slice %4 {offsets = [1, 0, 0], sizes = [1, 1, 32], strides = [1, 1, 1]} : vector<3x1x32xf32> to vector<1x1x32xf32>
    %28 = vector.shape_cast %27 : vector<1x1x32xf32> to vector<1x32xf32>
    %29 = vector.broadcast %28 : vector<1x32xf32> to vector<16x32xf32>
    %30 = arith.addf %26, %29 : vector<16x32xf32>
    %31 = vector.extract_strided_slice %2 {offsets = [2, 0, 0], sizes = [1, 4, 32], strides = [1, 1, 1]} : vector<3x4x32xf32> to vector<1x4x32xf32>
    %32 = vector.shape_cast %31 : vector<1x4x32xf32> to vector<4x32xf32>
    %cst_13 = arith.constant dense<0.000000e+00> : vector<16x32xf32>
    %33 = tpu.matmul %0, %32, %cst_13 {dimension_numbers = #tpu.dot_dimension_numbers<[1], [0], [0], [1], [0, 0, 1, 1], [], []>} : vector<16x4xf32>, vector<4x32xf32>, vector<16x32xf32> -> vector<16x32xf32>
    %34 = vector.extract_strided_slice %3 {offsets = [2, 0, 0], sizes = [1, 1, 32], strides = [1, 1, 1]} : vector<3x1x32xf32> to vector<1x1x32xf32>
    %35 = vector.shape_cast %34 : vector<1x1x32xf32> to vector<1x32xf32>
    %36 = vector.broadcast %1 : vector<16x1xf32> to vector<16x32xf32>
    %37 = vector.broadcast %35 : vector<1x32xf32> to vector<16x32xf32>
    %38 = arith.mulf %36, %37 : vector<16x32xf32>
    %39 = arith.addf %33, %38 : vector<16x32xf32>
    %40 = vector.extract_strided_slice %4 {offsets = [2, 0, 0], sizes = [1, 1, 32], strides = [1, 1, 1]} : vector<3x1x32xf32> to vector<1x1x32xf32>
    %41 = vector.shape_cast %40 : vector<1x1x32xf32> to vector<1x32xf32>
    %42 = vector.broadcast %41 : vector<1x32xf32> to vector<16x32xf32>
    %43 = arith.addf %39, %42 : vector<16x32xf32>
    %c0_14 = arith.constant 0 : index
    %c0_15 = arith.constant 0 : index
    %c0_16 = arith.constant 0 : index
    %44 = vector.load %arg4[%c0_14, %c0_15, %c0_16] : memref<3x32x32xf32, #tpu.memory_space<vmem>>, vector<1x32x32xf32>
    %45 = vector.shape_cast %44 : vector<1x32x32xf32> to vector<32x32xf32>
    %c1 = arith.constant 1 : index
    %c0_17 = arith.constant 0 : index
    %c0_18 = arith.constant 0 : index
    %46 = vector.load %arg4[%c1, %c0_17, %c0_18] : memref<3x32x32xf32, #tpu.memory_space<vmem>>, vector<1x32x32xf32>
    %47 = vector.shape_cast %46 : vector<1x32x32xf32> to vector<32x32xf32>
    %c2 = arith.constant 2 : index
    %c0_19 = arith.constant 0 : index
    %c0_20 = arith.constant 0 : index
    %48 = vector.load %arg4[%c2, %c0_19, %c0_20] : memref<3x32x32xf32, #tpu.memory_space<vmem>>, vector<1x32x32xf32>
    %49 = vector.shape_cast %48 : vector<1x32x32xf32> to vector<32x32xf32>
    %c0_21 = arith.constant 0 : index
    %c0_22 = arith.constant 0 : index
    %50 = vector.load %arg6[%c0_21, %c0_22] : memref<1x32xf32, #tpu.memory_space<vmem>>, vector<1x32xf32>
    %51 = vector.shape_cast %50 : vector<1x32xf32> to vector<1x32xf32>
    %52 = vector.broadcast %51 : vector<1x32xf32> to vector<2x32xf32>
    %cst_23 = arith.constant 0.000000e+00 : f32
    %53 = vector.broadcast %cst_23 : f32 to vector<2x32xf32>
    %cst_24 = arith.constant dense<0.000000e+00> : vector<2x32xf32>
    %54 = tpu.matmul %53, %45, %cst_24 {dimension_numbers = #tpu.dot_dimension_numbers<[1], [0], [0], [1], [0, 0, 1, 1], [], []>} : vector<2x32xf32>, vector<32x32xf32>, vector<2x32xf32> -> vector<2x32xf32>
    %cst_25 = arith.constant dense<0.000000e+00> : vector<2x32xf32>
    %55 = tpu.matmul %53, %47, %cst_25 {dimension_numbers = #tpu.dot_dimension_numbers<[1], [0], [0], [1], [0, 0, 1, 1], [], []>} : vector<2x32xf32>, vector<32x32xf32>, vector<2x32xf32> -> vector<2x32xf32>
    %cst_26 = arith.constant dense<0.000000e+00> : vector<2x32xf32>
    %56 = tpu.matmul %53, %49, %cst_26 {dimension_numbers = #tpu.dot_dimension_numbers<[1], [0], [0], [1], [0, 0, 1, 1], [], []>} : vector<2x32xf32>, vector<32x32xf32>, vector<2x32xf32> -> vector<2x32xf32>
    %57 = vector.extract_strided_slice %17 {offsets = [14, 0], sizes = [2, 32], strides = [1, 1]} : vector<16x32xf32> to vector<2x32xf32>
    %58 = arith.addf %57, %54 : vector<2x32xf32>
    %59 = arith.negf %58 : vector<2x32xf32>
    %60 = math.exp %59 : vector<2x32xf32>
    %cst_27 = arith.constant 1.000000e+00 : f32
    %61 = vector.broadcast %cst_27 : f32 to vector<2x32xf32>
    %62 = arith.addf %61, %60 : vector<2x32xf32>
    %63 = arith.divf %61, %62 : vector<2x32xf32>
    %64 = vector.extract_strided_slice %30 {offsets = [14, 0], sizes = [2, 32], strides = [1, 1]} : vector<16x32xf32> to vector<2x32xf32>
    %65 = arith.addf %64, %55 : vector<2x32xf32>
    %66 = arith.negf %65 : vector<2x32xf32>
    %67 = math.exp %66 : vector<2x32xf32>
    %cst_28 = arith.constant 1.000000e+00 : f32
    %68 = vector.broadcast %cst_28 : f32 to vector<2x32xf32>
    %69 = arith.addf %68, %67 : vector<2x32xf32>
    %70 = arith.divf %68, %69 : vector<2x32xf32>
    %71 = vector.extract_strided_slice %43 {offsets = [14, 0], sizes = [2, 32], strides = [1, 1]} : vector<16x32xf32> to vector<2x32xf32>
    %72 = arith.addf %56, %52 : vector<2x32xf32>
    %73 = arith.mulf %63, %72 : vector<2x32xf32>
    %74 = arith.addf %71, %73 : vector<2x32xf32>
    %75 = math.tanh %74 : vector<2x32xf32>
    %cst_29 = arith.constant 1.000000e+00 : f32
    %76 = vector.broadcast %cst_29 : f32 to vector<2x32xf32>
    %77 = arith.subf %76, %70 : vector<2x32xf32>
    %78 = arith.mulf %77, %75 : vector<2x32xf32>
    %79 = arith.mulf %70, %53 : vector<2x32xf32>
    %80 = arith.addf %78, %79 : vector<2x32xf32>
    %cst_30 = arith.constant dense<0.000000e+00> : vector<2x32xf32>
    %81 = tpu.matmul %80, %45, %cst_30 {dimension_numbers = #tpu.dot_dimension_numbers<[1], [0], [0], [1], [0, 0, 1, 1], [], []>} : vector<2x32xf32>, vector<32x32xf32>, vector<2x32xf32> -> vector<2x32xf32>
    %cst_31 = arith.constant dense<0.000000e+00> : vector<2x32xf32>
    %82 = tpu.matmul %80, %47, %cst_31 {dimension_numbers = #tpu.dot_dimension_numbers<[1], [0], [0], [1], [0, 0, 1, 1], [], []>} : vector<2x32xf32>, vector<32x32xf32>, vector<2x32xf32> -> vector<2x32xf32>
    %cst_32 = arith.constant dense<0.000000e+00> : vector<2x32xf32>
    %83 = tpu.matmul %80, %49, %cst_32 {dimension_numbers = #tpu.dot_dimension_numbers<[1], [0], [0], [1], [0, 0, 1, 1], [], []>} : vector<2x32xf32>, vector<32x32xf32>, vector<2x32xf32> -> vector<2x32xf32>
    %84 = vector.extract_strided_slice %17 {offsets = [12, 0], sizes = [2, 32], strides = [1, 1]} : vector<16x32xf32> to vector<2x32xf32>
    %85 = arith.addf %84, %81 : vector<2x32xf32>
    %86 = arith.negf %85 : vector<2x32xf32>
    %87 = math.exp %86 : vector<2x32xf32>
    %cst_33 = arith.constant 1.000000e+00 : f32
    %88 = vector.broadcast %cst_33 : f32 to vector<2x32xf32>
    %89 = arith.addf %88, %87 : vector<2x32xf32>
    %90 = arith.divf %88, %89 : vector<2x32xf32>
    %91 = vector.extract_strided_slice %30 {offsets = [12, 0], sizes = [2, 32], strides = [1, 1]} : vector<16x32xf32> to vector<2x32xf32>
    %92 = arith.addf %91, %82 : vector<2x32xf32>
    %93 = arith.negf %92 : vector<2x32xf32>
    %94 = math.exp %93 : vector<2x32xf32>
    %cst_34 = arith.constant 1.000000e+00 : f32
    %95 = vector.broadcast %cst_34 : f32 to vector<2x32xf32>
    %96 = arith.addf %95, %94 : vector<2x32xf32>
    %97 = arith.divf %95, %96 : vector<2x32xf32>
    %98 = vector.extract_strided_slice %43 {offsets = [12, 0], sizes = [2, 32], strides = [1, 1]} : vector<16x32xf32> to vector<2x32xf32>
    %99 = arith.addf %83, %52 : vector<2x32xf32>
    %100 = arith.mulf %90, %99 : vector<2x32xf32>
    %101 = arith.addf %98, %100 : vector<2x32xf32>
    %102 = math.tanh %101 : vector<2x32xf32>
    %cst_35 = arith.constant 1.000000e+00 : f32
    %103 = vector.broadcast %cst_35 : f32 to vector<2x32xf32>
    %104 = arith.subf %103, %97 : vector<2x32xf32>
    %105 = arith.mulf %104, %102 : vector<2x32xf32>
    %106 = arith.mulf %97, %80 : vector<2x32xf32>
    %107 = arith.addf %105, %106 : vector<2x32xf32>
    %cst_36 = arith.constant dense<0.000000e+00> : vector<2x32xf32>
    %108 = tpu.matmul %107, %45, %cst_36 {dimension_numbers = #tpu.dot_dimension_numbers<[1], [0], [0], [1], [0, 0, 1, 1], [], []>} : vector<2x32xf32>, vector<32x32xf32>, vector<2x32xf32> -> vector<2x32xf32>
    %cst_37 = arith.constant dense<0.000000e+00> : vector<2x32xf32>
    %109 = tpu.matmul %107, %47, %cst_37 {dimension_numbers = #tpu.dot_dimension_numbers<[1], [0], [0], [1], [0, 0, 1, 1], [], []>} : vector<2x32xf32>, vector<32x32xf32>, vector<2x32xf32> -> vector<2x32xf32>
    %cst_38 = arith.constant dense<0.000000e+00> : vector<2x32xf32>
    %110 = tpu.matmul %107, %49, %cst_38 {dimension_numbers = #tpu.dot_dimension_numbers<[1], [0], [0], [1], [0, 0, 1, 1], [], []>} : vector<2x32xf32>, vector<32x32xf32>, vector<2x32xf32> -> vector<2x32xf32>
    %111 = vector.extract_strided_slice %17 {offsets = [10, 0], sizes = [2, 32], strides = [1, 1]} : vector<16x32xf32> to vector<2x32xf32>
    %112 = arith.addf %111, %108 : vector<2x32xf32>
    %113 = arith.negf %112 : vector<2x32xf32>
    %114 = math.exp %113 : vector<2x32xf32>
    %cst_39 = arith.constant 1.000000e+00 : f32
    %115 = vector.broadcast %cst_39 : f32 to vector<2x32xf32>
    %116 = arith.addf %115, %114 : vector<2x32xf32>
    %117 = arith.divf %115, %116 : vector<2x32xf32>
    %118 = vector.extract_strided_slice %30 {offsets = [10, 0], sizes = [2, 32], strides = [1, 1]} : vector<16x32xf32> to vector<2x32xf32>
    %119 = arith.addf %118, %109 : vector<2x32xf32>
    %120 = arith.negf %119 : vector<2x32xf32>
    %121 = math.exp %120 : vector<2x32xf32>
    %cst_40 = arith.constant 1.000000e+00 : f32
    %122 = vector.broadcast %cst_40 : f32 to vector<2x32xf32>
    %123 = arith.addf %122, %121 : vector<2x32xf32>
    %124 = arith.divf %122, %123 : vector<2x32xf32>
    %125 = vector.extract_strided_slice %43 {offsets = [10, 0], sizes = [2, 32], strides = [1, 1]} : vector<16x32xf32> to vector<2x32xf32>
    %126 = arith.addf %110, %52 : vector<2x32xf32>
    %127 = arith.mulf %117, %126 : vector<2x32xf32>
    %128 = arith.addf %125, %127 : vector<2x32xf32>
    %129 = math.tanh %128 : vector<2x32xf32>
    %cst_41 = arith.constant 1.000000e+00 : f32
    %130 = vector.broadcast %cst_41 : f32 to vector<2x32xf32>
    %131 = arith.subf %130, %124 : vector<2x32xf32>
    %132 = arith.mulf %131, %129 : vector<2x32xf32>
    %133 = arith.mulf %124, %107 : vector<2x32xf32>
    %134 = arith.addf %132, %133 : vector<2x32xf32>
    %cst_42 = arith.constant dense<0.000000e+00> : vector<2x32xf32>
    %135 = tpu.matmul %134, %45, %cst_42 {dimension_numbers = #tpu.dot_dimension_numbers<[1], [0], [0], [1], [0, 0, 1, 1], [], []>} : vector<2x32xf32>, vector<32x32xf32>, vector<2x32xf32> -> vector<2x32xf32>
    %cst_43 = arith.constant dense<0.000000e+00> : vector<2x32xf32>
    %136 = tpu.matmul %134, %47, %cst_43 {dimension_numbers = #tpu.dot_dimension_numbers<[1], [0], [0], [1], [0, 0, 1, 1], [], []>} : vector<2x32xf32>, vector<32x32xf32>, vector<2x32xf32> -> vector<2x32xf32>
    %cst_44 = arith.constant dense<0.000000e+00> : vector<2x32xf32>
    %137 = tpu.matmul %134, %49, %cst_44 {dimension_numbers = #tpu.dot_dimension_numbers<[1], [0], [0], [1], [0, 0, 1, 1], [], []>} : vector<2x32xf32>, vector<32x32xf32>, vector<2x32xf32> -> vector<2x32xf32>
    %138 = vector.extract_strided_slice %17 {offsets = [8, 0], sizes = [2, 32], strides = [1, 1]} : vector<16x32xf32> to vector<2x32xf32>
    %139 = arith.addf %138, %135 : vector<2x32xf32>
    %140 = arith.negf %139 : vector<2x32xf32>
    %141 = math.exp %140 : vector<2x32xf32>
    %cst_45 = arith.constant 1.000000e+00 : f32
    %142 = vector.broadcast %cst_45 : f32 to vector<2x32xf32>
    %143 = arith.addf %142, %141 : vector<2x32xf32>
    %144 = arith.divf %142, %143 : vector<2x32xf32>
    %145 = vector.extract_strided_slice %30 {offsets = [8, 0], sizes = [2, 32], strides = [1, 1]} : vector<16x32xf32> to vector<2x32xf32>
    %146 = arith.addf %145, %136 : vector<2x32xf32>
    %147 = arith.negf %146 : vector<2x32xf32>
    %148 = math.exp %147 : vector<2x32xf32>
    %cst_46 = arith.constant 1.000000e+00 : f32
    %149 = vector.broadcast %cst_46 : f32 to vector<2x32xf32>
    %150 = arith.addf %149, %148 : vector<2x32xf32>
    %151 = arith.divf %149, %150 : vector<2x32xf32>
    %152 = vector.extract_strided_slice %43 {offsets = [8, 0], sizes = [2, 32], strides = [1, 1]} : vector<16x32xf32> to vector<2x32xf32>
    %153 = arith.addf %137, %52 : vector<2x32xf32>
    %154 = arith.mulf %144, %153 : vector<2x32xf32>
    %155 = arith.addf %152, %154 : vector<2x32xf32>
    %156 = math.tanh %155 : vector<2x32xf32>
    %cst_47 = arith.constant 1.000000e+00 : f32
    %157 = vector.broadcast %cst_47 : f32 to vector<2x32xf32>
    %158 = arith.subf %157, %151 : vector<2x32xf32>
    %159 = arith.mulf %158, %156 : vector<2x32xf32>
    %160 = arith.mulf %151, %134 : vector<2x32xf32>
    %161 = arith.addf %159, %160 : vector<2x32xf32>
    %cst_48 = arith.constant dense<0.000000e+00> : vector<2x32xf32>
    %162 = tpu.matmul %161, %45, %cst_48 {dimension_numbers = #tpu.dot_dimension_numbers<[1], [0], [0], [1], [0, 0, 1, 1], [], []>} : vector<2x32xf32>, vector<32x32xf32>, vector<2x32xf32> -> vector<2x32xf32>
    %cst_49 = arith.constant dense<0.000000e+00> : vector<2x32xf32>
    %163 = tpu.matmul %161, %47, %cst_49 {dimension_numbers = #tpu.dot_dimension_numbers<[1], [0], [0], [1], [0, 0, 1, 1], [], []>} : vector<2x32xf32>, vector<32x32xf32>, vector<2x32xf32> -> vector<2x32xf32>
    %cst_50 = arith.constant dense<0.000000e+00> : vector<2x32xf32>
    %164 = tpu.matmul %161, %49, %cst_50 {dimension_numbers = #tpu.dot_dimension_numbers<[1], [0], [0], [1], [0, 0, 1, 1], [], []>} : vector<2x32xf32>, vector<32x32xf32>, vector<2x32xf32> -> vector<2x32xf32>
    %165 = vector.extract_strided_slice %17 {offsets = [6, 0], sizes = [2, 32], strides = [1, 1]} : vector<16x32xf32> to vector<2x32xf32>
    %166 = arith.addf %165, %162 : vector<2x32xf32>
    %167 = arith.negf %166 : vector<2x32xf32>
    %168 = math.exp %167 : vector<2x32xf32>
    %cst_51 = arith.constant 1.000000e+00 : f32
    %169 = vector.broadcast %cst_51 : f32 to vector<2x32xf32>
    %170 = arith.addf %169, %168 : vector<2x32xf32>
    %171 = arith.divf %169, %170 : vector<2x32xf32>
    %172 = vector.extract_strided_slice %30 {offsets = [6, 0], sizes = [2, 32], strides = [1, 1]} : vector<16x32xf32> to vector<2x32xf32>
    %173 = arith.addf %172, %163 : vector<2x32xf32>
    %174 = arith.negf %173 : vector<2x32xf32>
    %175 = math.exp %174 : vector<2x32xf32>
    %cst_52 = arith.constant 1.000000e+00 : f32
    %176 = vector.broadcast %cst_52 : f32 to vector<2x32xf32>
    %177 = arith.addf %176, %175 : vector<2x32xf32>
    %178 = arith.divf %176, %177 : vector<2x32xf32>
    %179 = vector.extract_strided_slice %43 {offsets = [6, 0], sizes = [2, 32], strides = [1, 1]} : vector<16x32xf32> to vector<2x32xf32>
    %180 = arith.addf %164, %52 : vector<2x32xf32>
    %181 = arith.mulf %171, %180 : vector<2x32xf32>
    %182 = arith.addf %179, %181 : vector<2x32xf32>
    %183 = math.tanh %182 : vector<2x32xf32>
    %cst_53 = arith.constant 1.000000e+00 : f32
    %184 = vector.broadcast %cst_53 : f32 to vector<2x32xf32>
    %185 = arith.subf %184, %178 : vector<2x32xf32>
    %186 = arith.mulf %185, %183 : vector<2x32xf32>
    %187 = arith.mulf %178, %161 : vector<2x32xf32>
    %188 = arith.addf %186, %187 : vector<2x32xf32>
    %cst_54 = arith.constant dense<0.000000e+00> : vector<2x32xf32>
    %189 = tpu.matmul %188, %45, %cst_54 {dimension_numbers = #tpu.dot_dimension_numbers<[1], [0], [0], [1], [0, 0, 1, 1], [], []>} : vector<2x32xf32>, vector<32x32xf32>, vector<2x32xf32> -> vector<2x32xf32>
    %cst_55 = arith.constant dense<0.000000e+00> : vector<2x32xf32>
    %190 = tpu.matmul %188, %47, %cst_55 {dimension_numbers = #tpu.dot_dimension_numbers<[1], [0], [0], [1], [0, 0, 1, 1], [], []>} : vector<2x32xf32>, vector<32x32xf32>, vector<2x32xf32> -> vector<2x32xf32>
    %cst_56 = arith.constant dense<0.000000e+00> : vector<2x32xf32>
    %191 = tpu.matmul %188, %49, %cst_56 {dimension_numbers = #tpu.dot_dimension_numbers<[1], [0], [0], [1], [0, 0, 1, 1], [], []>} : vector<2x32xf32>, vector<32x32xf32>, vector<2x32xf32> -> vector<2x32xf32>
    %192 = vector.extract_strided_slice %17 {offsets = [4, 0], sizes = [2, 32], strides = [1, 1]} : vector<16x32xf32> to vector<2x32xf32>
    %193 = arith.addf %192, %189 : vector<2x32xf32>
    %194 = arith.negf %193 : vector<2x32xf32>
    %195 = math.exp %194 : vector<2x32xf32>
    %cst_57 = arith.constant 1.000000e+00 : f32
    %196 = vector.broadcast %cst_57 : f32 to vector<2x32xf32>
    %197 = arith.addf %196, %195 : vector<2x32xf32>
    %198 = arith.divf %196, %197 : vector<2x32xf32>
    %199 = vector.extract_strided_slice %30 {offsets = [4, 0], sizes = [2, 32], strides = [1, 1]} : vector<16x32xf32> to vector<2x32xf32>
    %200 = arith.addf %199, %190 : vector<2x32xf32>
    %201 = arith.negf %200 : vector<2x32xf32>
    %202 = math.exp %201 : vector<2x32xf32>
    %cst_58 = arith.constant 1.000000e+00 : f32
    %203 = vector.broadcast %cst_58 : f32 to vector<2x32xf32>
    %204 = arith.addf %203, %202 : vector<2x32xf32>
    %205 = arith.divf %203, %204 : vector<2x32xf32>
    %206 = vector.extract_strided_slice %43 {offsets = [4, 0], sizes = [2, 32], strides = [1, 1]} : vector<16x32xf32> to vector<2x32xf32>
    %207 = arith.addf %191, %52 : vector<2x32xf32>
    %208 = arith.mulf %198, %207 : vector<2x32xf32>
    %209 = arith.addf %206, %208 : vector<2x32xf32>
    %210 = math.tanh %209 : vector<2x32xf32>
    %cst_59 = arith.constant 1.000000e+00 : f32
    %211 = vector.broadcast %cst_59 : f32 to vector<2x32xf32>
    %212 = arith.subf %211, %205 : vector<2x32xf32>
    %213 = arith.mulf %212, %210 : vector<2x32xf32>
    %214 = arith.mulf %205, %188 : vector<2x32xf32>
    %215 = arith.addf %213, %214 : vector<2x32xf32>
    %cst_60 = arith.constant dense<0.000000e+00> : vector<2x32xf32>
    %216 = tpu.matmul %215, %45, %cst_60 {dimension_numbers = #tpu.dot_dimension_numbers<[1], [0], [0], [1], [0, 0, 1, 1], [], []>} : vector<2x32xf32>, vector<32x32xf32>, vector<2x32xf32> -> vector<2x32xf32>
    %cst_61 = arith.constant dense<0.000000e+00> : vector<2x32xf32>
    %217 = tpu.matmul %215, %47, %cst_61 {dimension_numbers = #tpu.dot_dimension_numbers<[1], [0], [0], [1], [0, 0, 1, 1], [], []>} : vector<2x32xf32>, vector<32x32xf32>, vector<2x32xf32> -> vector<2x32xf32>
    %cst_62 = arith.constant dense<0.000000e+00> : vector<2x32xf32>
    %218 = tpu.matmul %215, %49, %cst_62 {dimension_numbers = #tpu.dot_dimension_numbers<[1], [0], [0], [1], [0, 0, 1, 1], [], []>} : vector<2x32xf32>, vector<32x32xf32>, vector<2x32xf32> -> vector<2x32xf32>
    %219 = vector.extract_strided_slice %17 {offsets = [2, 0], sizes = [2, 32], strides = [1, 1]} : vector<16x32xf32> to vector<2x32xf32>
    %220 = arith.addf %219, %216 : vector<2x32xf32>
    %221 = arith.negf %220 : vector<2x32xf32>
    %222 = math.exp %221 : vector<2x32xf32>
    %cst_63 = arith.constant 1.000000e+00 : f32
    %223 = vector.broadcast %cst_63 : f32 to vector<2x32xf32>
    %224 = arith.addf %223, %222 : vector<2x32xf32>
    %225 = arith.divf %223, %224 : vector<2x32xf32>
    %226 = vector.extract_strided_slice %30 {offsets = [2, 0], sizes = [2, 32], strides = [1, 1]} : vector<16x32xf32> to vector<2x32xf32>
    %227 = arith.addf %226, %217 : vector<2x32xf32>
    %228 = arith.negf %227 : vector<2x32xf32>
    %229 = math.exp %228 : vector<2x32xf32>
    %cst_64 = arith.constant 1.000000e+00 : f32
    %230 = vector.broadcast %cst_64 : f32 to vector<2x32xf32>
    %231 = arith.addf %230, %229 : vector<2x32xf32>
    %232 = arith.divf %230, %231 : vector<2x32xf32>
    %233 = vector.extract_strided_slice %43 {offsets = [2, 0], sizes = [2, 32], strides = [1, 1]} : vector<16x32xf32> to vector<2x32xf32>
    %234 = arith.addf %218, %52 : vector<2x32xf32>
    %235 = arith.mulf %225, %234 : vector<2x32xf32>
    %236 = arith.addf %233, %235 : vector<2x32xf32>
    %237 = math.tanh %236 : vector<2x32xf32>
    %cst_65 = arith.constant 1.000000e+00 : f32
    %238 = vector.broadcast %cst_65 : f32 to vector<2x32xf32>
    %239 = arith.subf %238, %232 : vector<2x32xf32>
    %240 = arith.mulf %239, %237 : vector<2x32xf32>
    %241 = arith.mulf %232, %215 : vector<2x32xf32>
    %242 = arith.addf %240, %241 : vector<2x32xf32>
    %cst_66 = arith.constant dense<0.000000e+00> : vector<2x32xf32>
    %243 = tpu.matmul %242, %45, %cst_66 {dimension_numbers = #tpu.dot_dimension_numbers<[1], [0], [0], [1], [0, 0, 1, 1], [], []>} : vector<2x32xf32>, vector<32x32xf32>, vector<2x32xf32> -> vector<2x32xf32>
    %cst_67 = arith.constant dense<0.000000e+00> : vector<2x32xf32>
    %244 = tpu.matmul %242, %47, %cst_67 {dimension_numbers = #tpu.dot_dimension_numbers<[1], [0], [0], [1], [0, 0, 1, 1], [], []>} : vector<2x32xf32>, vector<32x32xf32>, vector<2x32xf32> -> vector<2x32xf32>
    %cst_68 = arith.constant dense<0.000000e+00> : vector<2x32xf32>
    %245 = tpu.matmul %242, %49, %cst_68 {dimension_numbers = #tpu.dot_dimension_numbers<[1], [0], [0], [1], [0, 0, 1, 1], [], []>} : vector<2x32xf32>, vector<32x32xf32>, vector<2x32xf32> -> vector<2x32xf32>
    %246 = vector.extract_strided_slice %17 {offsets = [0, 0], sizes = [2, 32], strides = [1, 1]} : vector<16x32xf32> to vector<2x32xf32>
    %247 = arith.addf %246, %243 : vector<2x32xf32>
    %248 = arith.negf %247 : vector<2x32xf32>
    %249 = math.exp %248 : vector<2x32xf32>
    %cst_69 = arith.constant 1.000000e+00 : f32
    %250 = vector.broadcast %cst_69 : f32 to vector<2x32xf32>
    %251 = arith.addf %250, %249 : vector<2x32xf32>
    %252 = arith.divf %250, %251 : vector<2x32xf32>
    %253 = vector.extract_strided_slice %30 {offsets = [0, 0], sizes = [2, 32], strides = [1, 1]} : vector<16x32xf32> to vector<2x32xf32>
    %254 = arith.addf %253, %244 : vector<2x32xf32>
    %255 = arith.negf %254 : vector<2x32xf32>
    %256 = math.exp %255 : vector<2x32xf32>
    %cst_70 = arith.constant 1.000000e+00 : f32
    %257 = vector.broadcast %cst_70 : f32 to vector<2x32xf32>
    %258 = arith.addf %257, %256 : vector<2x32xf32>
    %259 = arith.divf %257, %258 : vector<2x32xf32>
    %260 = vector.extract_strided_slice %43 {offsets = [0, 0], sizes = [2, 32], strides = [1, 1]} : vector<16x32xf32> to vector<2x32xf32>
    %261 = arith.addf %245, %52 : vector<2x32xf32>
    %262 = arith.mulf %252, %261 : vector<2x32xf32>
    %263 = arith.addf %260, %262 : vector<2x32xf32>
    %264 = math.tanh %263 : vector<2x32xf32>
    %cst_71 = arith.constant 1.000000e+00 : f32
    %265 = vector.broadcast %cst_71 : f32 to vector<2x32xf32>
    %266 = arith.subf %265, %259 : vector<2x32xf32>
    %267 = arith.mulf %266, %264 : vector<2x32xf32>
    %268 = arith.mulf %259, %242 : vector<2x32xf32>
    %269 = arith.addf %267, %268 : vector<2x32xf32>
    %c0_72 = arith.constant 0 : index
    %c0_73 = arith.constant 0 : index
    %270 = vector.load %arg7[%c0_72, %c0_73] : memref<32x16xf32, #tpu.memory_space<vmem>>, vector<32x16xf32>
    %cst_74 = arith.constant dense<0.000000e+00> : vector<2x16xf32>
    %271 = tpu.matmul %269, %270, %cst_74 {dimension_numbers = #tpu.dot_dimension_numbers<[1], [0], [0], [1], [0, 0, 1, 1], [], []>} : vector<2x32xf32>, vector<32x16xf32>, vector<2x16xf32> -> vector<2x16xf32>
    %c0_75 = arith.constant 0 : index
    %c0_76 = arith.constant 0 : index
    %272 = vector.load %arg8[%c0_75, %c0_76] : memref<1x16xf32, #tpu.memory_space<vmem>>, vector<1x16xf32>
    %273 = vector.broadcast %272 : vector<1x16xf32> to vector<2x16xf32>
    %274 = arith.addf %271, %273 : vector<2x16xf32>
    %c0_77 = arith.constant 0 : index
    %c0_78 = arith.constant 0 : index
    %275 = vector.load %arg9[%c0_77, %c0_78] : memref<2x16xf32, #tpu.memory_space<vmem>>, vector<2x16xf32>
    tpu.vector_store %arg9[%c0_77, %c0_78], %274 {strides = array<i32>} : memref<2x16xf32, #tpu.memory_space<vmem>>, vector<2x16xf32>,
    return
  }
}

</mosaic_0001>

<llo_original>
// kernel: rnn_encoder_forward.1
$region0: #{rnn_encoder_forward.1}
  #allocation0 [shape = 'u32[]', space=smem, size = 0x4, offset = 0x4, fixed_abs, tag = 'smem constant byte address 0x4 - core index']
  #allocation1 [shape = 'u32[144,128]{1,0:T(1,128)}', space=vmem, size = 0x12000, scoped, tag = 'internal scratch']
  %s0 = inlined_call_operand.vmem [shape: f32[16,4], index: 0, kind: input, shape index: {}]
  %s1 = inlined_call_operand.vmem [shape: f32[16,1], index: 1, kind: input, shape index: {}]
  %s2 = inlined_call_operand.vmem [shape: f32[3,4,32], index: 2, kind: input, shape index: {}]
  %s3 = inlined_call_operand.vmem [shape: f32[3,1,32], index: 3, kind: input, shape index: {}]
  %s4 = inlined_call_operand.vmem [shape: f32[3,32,32], index: 4, kind: input, shape index: {}]
  %s5 = inlined_call_operand.vmem [shape: f32[3,1,32], index: 5, kind: input, shape index: {}]
  %s6 = inlined_call_operand.vmem [shape: f32[1,32], index: 6, kind: input, shape index: {}]
  %s7 = inlined_call_operand.vmem [shape: f32[32,16], index: 7, kind: input, shape index: {}]
  %s8 = inlined_call_operand.vmem [shape: f32[1,16], index: 8, kind: input, shape index: {}]
  %s9 = inlined_call_operand.vmem [shape: f32[2,16], index: 9, kind: output, shape index: {}]
  %s10 = sld [smem:[#allocation0]]
  $region46: #{rnn_encoder_forward.1} parent=0
    _
  %s12 = ssub.s32 1, %s10
  %s13 = scalar_select 0, %s12, %s10
  // Predicated region
  $region2: #{rnn_encoder_forward.1} parent=0 // pred_check
    _
  $region3: #{rnn_encoder_forward.1} parent=0 // pred_check_branch
    %15 = sbr.rel (0) target = $region5
  $region4: #{rnn_encoder_forward.1} parent=0 // pred_region
    _
  $region5: #{rnn_encoder_forward.1} parent=0 // pred_fallthru
    _
  // Predicated region
  $region6: #{rnn_encoder_forward.1} parent=0 // pred_check
    _
  $region7: #{rnn_encoder_forward.1} parent=0 // pred_check_branch
    %17 = sbr.rel (0) target = $region9
  $region8: #{rnn_encoder_forward.1} parent=0 // pred_region
    _
  $region9: #{rnn_encoder_forward.1} parent=0 // pred_fallthru
    _
  // Predicated region
  $region10: #{rnn_encoder_forward.1} parent=0 // pred_check
    _
  $region11: #{rnn_encoder_forward.1} parent=0 // pred_check_branch
    %19 = sbr.rel (0) target = $region13
  $region12: #{rnn_encoder_forward.1} parent=0 // pred_region
    _
  $region13: #{rnn_encoder_forward.1} parent=0 // pred_fallthru
    _
  // Predicated region
  $region14: #{rnn_encoder_forward.1} parent=0 // pred_check
    _
  $region15: #{rnn_encoder_forward.1} parent=0 // pred_check_branch
    %21 = sbr.rel (0) target = $region17
  $region16: #{rnn_encoder_forward.1} parent=0 // pred_region
    _
  $region17: #{rnn_encoder_forward.1} parent=0 // pred_fallthru
    _
  // Predicated region
  $region18: #{rnn_encoder_forward.1} parent=0 // pred_check
    _
  $region19: #{rnn_encoder_forward.1} parent=0 // pred_check_branch
    %23 = sbr.rel (0) target = $region21
  $region20: #{rnn_encoder_forward.1} parent=0 // pred_region
    _
  $region21: #{rnn_encoder_forward.1} parent=0 // pred_fallthru
    _
  // Predicated region
  $region22: #{rnn_encoder_forward.1} parent=0 // pred_check
    _
  $region23: #{rnn_encoder_forward.1} parent=0 // pred_check_branch
    %25 = sbr.rel (0) target = $region25
  $region24: #{rnn_encoder_forward.1} parent=0 // pred_region
    _
  $region25: #{rnn_encoder_forward.1} parent=0 // pred_fallthru
    _
  // Predicated region
  $region26: #{rnn_encoder_forward.1} parent=0 // pred_check
    _
  $region27: #{rnn_encoder_forward.1} parent=0 // pred_check_branch
    %27 = sbr.rel (0) target = $region29
  $region28: #{rnn_encoder_forward.1} parent=0 // pred_region
    _
  $region29: #{rnn_encoder_forward.1} parent=0 // pred_fallthru
    _
  // Predicated region
  $region30: #{rnn_encoder_forward.1} parent=0 // pred_check
    _
  $region31: #{rnn_encoder_forward.1} parent=0 // pred_check_branch
    %29 = sbr.rel (0) target = $region33
  $region32: #{rnn_encoder_forward.1} parent=0 // pred_region
    _
  $region33: #{rnn_encoder_forward.1} parent=0 // pred_fallthru
    _
  // Predicated region
  $region34: #{rnn_encoder_forward.1} parent=0 // pred_check
    _
  $region35: #{rnn_encoder_forward.1} parent=0 // pred_check_branch
    %31 = sbr.rel (0) target = $region37
  $region36: #{rnn_encoder_forward.1} parent=0 // pred_region
    _
  $region37: #{rnn_encoder_forward.1} parent=0 // pred_fallthru
    _
  %v32 = vld [vmem:[%s0] sm:$0xff]
  %v33 = vld [vmem:[%s0 + $0x8] sm:$0xff]
  %v34 = vld [vmem:[%s1] sm:$0xff]
  %v35 = vld [vmem:[%s1 + $0x8] sm:$0xff]
  %v36 = vld [vmem:[%s2] sm:$0xf]
  %v37 = vld [vmem:[%s2 + $0x4] sm:$0xf]
  %v38 = vld [vmem:[%s2 + $0x8] sm:$0xf]
  %v39 = vld [vmem:[%s3] sm:$0x1]
  %v40 = vld [vmem:[%s3 + $0x1] sm:$0x1]
  %v41 = vld [vmem:[%s3 + $0x2] sm:$0x1]
  %v42 = vld [vmem:[%s5] sm:$0x1]
  %v43 = vld [vmem:[%s5 + $0x1] sm:$0x1]
  %v44 = vld [vmem:[%s5 + $0x2] sm:$0x1]
  %46 = vset.pattern.permute.xlu0 0
  %47 = vperm.xlu0 %46, %v34
  %v48 = vpop.permute.xlu0 %47
  %51 = vset.pattern.permute.xlu0 0
  %52 = vperm.xlu0 %51, %v35
  %v53 = vpop.permute.xlu0 %52
  %v56 = vlaneseq
  %v57 = vshrl.u32 %v56, 7
  %v58 = vsub.s32 0, %v57
  %v59 = vrot.slane %v39, %v58
  %v61 = vmul.f32 %v48, %v59
  %v62 = vmul.f32 %v53, %v59
  %vm63 = vcmask 31744
  %v65 = vsel %vm63, %v32, 0
  %v68 = vsel %vm63, %v33, 0
  %vm70 = vcmask 1043456
  %v72 = vsel %vm70, %v36, 0
  %74 = vmatprep.subr.mxu0 0.0
  %75 = vmatpush1.msra.mxu0 0.0
  %76 = vmatprep.subr.mxu0 0.0
  %77 = vmatpush1.msra.mxu0 0.0
  %78 = vmatprep.subr.mxu0 0.0
  %79 = vmatpush1.msra.mxu0 0.0
  %80 = vmatprep.subr.mxu0 0.0
  %81 = vmatpush1.msra.mxu0 0.0
  %82 = vmatprep.subr.mxu0 0.0
  %83 = vmatpush1.msra.mxu0 0.0
  %84 = vmatprep.subr.mxu0 0.0
  %85 = vmatpush1.msra.mxu0 0.0
  %86 = vmatprep.subr.mxu0 0.0
  %87 = vmatpush1.msra.mxu0 0.0
  %88 = vmatprep.subr.mxu0 0.0
  %89 = vmatpush1.msra.mxu0 0.0
  %90 = vmatprep.subr.mxu0 0.0
  %91 = vmatpush1.msra.mxu0 0.0
  %92 = vmatprep.subr.mxu0 0.0
  %93 = vmatpush1.msra.mxu0 0.0
  %94 = vmatprep.subr.mxu0 0.0
  %95 = vmatpush1.msra.mxu0 0.0
  %96 = vmatprep.subr.mxu0 0.0
  %97 = vmatpush1.msra.mxu0 0.0
  %98 = vmatprep.subr.mxu0 0.0
  %99 = vmatpush1.msra.mxu0 0.0
  %100 = vmatprep.subr.mxu0 0.0
  %101 = vmatpush1.msra.mxu0 0.0
  %102 = vmatprep.subr.mxu0 0.0
  %103 = vmatpush1.msra.mxu0 0.0
  %104 = vmatprep.subr.mxu0 0.0
  %105 = vmatpush1.msra.mxu0 %v72
  %106 = vmatprep.subr.mxu0 0.0
  %107 = vmatpush2.msra.mxu0 0.0
  %108 = vmatprep.subr.mxu0 0.0
  %109 = vmatpush2.msra.mxu0 0.0
  %110 = vmatprep.subr.mxu0 0.0
  %111 = vmatpush2.msra.mxu0 0.0
  %112 = vmatprep.subr.mxu0 0.0
  %113 = vmatpush2.msra.mxu0 0.0
  %114 = vmatprep.subr.mxu0 0.0
  %115 = vmatpush2.msra.mxu0 0.0
  %116 = vmatprep.subr.mxu0 0.0
  %117 = vmatpush2.msra.mxu0 0.0
  %118 = vmatprep.subr.mxu0 0.0
  %119 = vmatpush2.msra.mxu0 0.0
  %120 = vmatprep.subr.mxu0 0.0
  %121 = vmatpush2.msra.mxu0 0.0
  %122 = vmatprep.subr.mxu0 0.0
  %123 = vmatpush2.msra.mxu0 0.0
  %124 = vmatprep.subr.mxu0 0.0
  %125 = vmatpush2.msra.mxu0 0.0
  %126 = vmatprep.subr.mxu0 0.0
  %127 = vmatpush2.msra.mxu0 0.0
  %128 = vmatprep.subr.mxu0 0.0
  %129 = vmatpush2.msra.mxu0 0.0
  %130 = vmatprep.subr.mxu0 0.0
  %131 = vmatpush2.msra.mxu0 0.0
  %132 = vmatprep.subr.mxu0 0.0
  %133 = vmatpush2.msra.mxu0 0.0
  %134 = vmatprep.subr.mxu0 0.0
  %135 = vmatpush2.msra.mxu0 0.0
  %136 = vmatprep.subr.mxu0 0.0
  %137 = vmatpush2.msra.mxu0 0.0
  %138 = vmatprep.mubr.f32.mxu0 0.0
  %139 = vmatmul.mubr.f32.gmra.mxu0 %v65
  %v140 = vpop.f32.mrf.mxu0
  %v141 = vadd.f32 %v61, %v140
  %v142 = vpop.f32.mrf.mxu0
  %143 = vmatprep.mubr.f32.mxu0 0.0
  %144 = vmatmul.mubr.f32.gmra.mxu0 %v68
  %v145 = vpop.f32.mrf.mxu0
  %v146 = vadd.f32 %v62, %v145
  %v147 = vpop.f32.mrf.mxu0
  %148 = vdwg.mxu0
  %v150 = vlaneseq
  %v151 = vshrl.u32 %v150, 7
  %v152 = vsub.s32 0, %v151
  %v153 = vrot.slane %v42, %v152
  %v155 = vadd.f32 %v141, %v153
  %v156 = vadd.f32 %v146, %v153
  %v158 = vlaneseq
  %v159 = vshrl.u32 %v158, 7
  %v160 = vsub.s32 0, %v159
  %v161 = vrot.slane %v40, %v160
  %v163 = vmul.f32 %v48, %v161
  %v164 = vmul.f32 %v53, %v161
  %v166 = vsel %vm70, %v37, 0
  %168 = vmatprep.subr.mxu0 0.0
  %169 = vmatpush1.msra.mxu0 0.0
  %170 = vmatprep.subr.mxu0 0.0
  %171 = vmatpush1.msra.mxu0 0.0
  %172 = vmatprep.subr.mxu0 0.0
  %173 = vmatpush1.msra.mxu0 0.0
  %174 = vmatprep.subr.mxu0 0.0
  %175 = vmatpush1.msra.mxu0 0.0
  %176 = vmatprep.subr.mxu0 0.0
  %177 = vmatpush1.msra.mxu0 0.0
  %178 = vmatprep.subr.mxu0 0.0
  %179 = vmatpush1.msra.mxu0 0.0
  %180 = vmatprep.subr.mxu0 0.0
  %181 = vmatpush1.msra.mxu0 0.0
  %182 = vmatprep.subr.mxu0 0.0
  %183 = vmatpush1.msra.mxu0 0.0
  %184 = vmatprep.subr.mxu0 0.0
  %185 = vmatpush1.msra.mxu0 0.0
  %186 = vmatprep.subr.mxu0 0.0
  %187 = vmatpush1.msra.mxu0 0.0
  %188 = vmatprep.subr.mxu0 0.0
  %189 = vmatpush1.msra.mxu0 0.0
  %190 = vmatprep.subr.mxu0 0.0
  %191 = vmatpush1.msra.mxu0 0.0
  %192 = vmatprep.subr.mxu0 0.0
  %193 = vmatpush1.msra.mxu0 0.0
  %194 = vmatprep.subr.mxu0 0.0
  %195 = vmatpush1.msra.mxu0 0.0
  %196 = vmatprep.subr.mxu0 0.0
  %197 = vmatpush1.msra.mxu0 0.0
  %198 = vmatprep.subr.mxu0 0.0
  %199 = vmatpush1.msra.mxu0 %v166
  %200 = vmatprep.subr.mxu0 0.0
  %201 = vmatpush2.msra.mxu0 0.0
  %202 = vmatprep.subr.mxu0 0.0
  %203 = vmatpush2.msra.mxu0 0.0
  %204 = vmatprep.subr.mxu0 0.0
  %205 = vmatpush2.msra.mxu0 0.0
  %206 = vmatprep.subr.mxu0 0.0
  %207 = vmatpush2.msra.mxu0 0.0
  %208 = vmatprep.subr.mxu0 0.0
  %209 = vmatpush2.msra.mxu0 0.0
  %210 = vmatprep.subr.mxu0 0.0
  %211 = vmatpush2.msra.mxu0 0.0
  %212 = vmatprep.subr.mxu0 0.0
  %213 = vmatpush2.msra.mxu0 0.0
  %214 = vmatprep.subr.mxu0 0.0
  %215 = vmatpush2.msra.mxu0 0.0
  %216 = vmatprep.subr.mxu0 0.0
  %217 = vmatpush2.msra.mxu0 0.0
  %218 = vmatprep.subr.mxu0 0.0
  %219 = vmatpush2.msra.mxu0 0.0
  %220 = vmatprep.subr.mxu0 0.0
  %221 = vmatpush2.msra.mxu0 0.0
  %222 = vmatprep.subr.mxu0 0.0
  %223 = vmatpush2.msra.mxu0 0.0
  %224 = vmatprep.subr.mxu0 0.0
  %225 = vmatpush2.msra.mxu0 0.0
  %226 = vmatprep.subr.mxu0 0.0
  %227 = vmatpush2.msra.mxu0 0.0
  %228 = vmatprep.subr.mxu0 0.0
  %229 = vmatpush2.msra.mxu0 0.0
  %230 = vmatprep.subr.mxu0 0.0
  %231 = vmatpush2.msra.mxu0 0.0
  %232 = vmatprep.mubr.f32.mxu0 0.0
  %233 = vmatmul.mubr.f32.gmra.mxu0 %v65
  %v234 = vpop.f32.mrf.mxu0
  %v235 = vadd.f32 %v163, %v234
  %v236 = vpop.f32.mrf.mxu0
  %237 = vmatprep.mubr.f32.mxu0 0.0
  %238 = vmatmul.mubr.f32.gmra.mxu0 %v68
  %v239 = vpop.f32.mrf.mxu0
  %v240 = vadd.f32 %v164, %v239
  %v241 = vpop.f32.mrf.mxu0
  %242 = vdwg.mxu0
  %v244 = vlaneseq
  %v245 = vshrl.u32 %v244, 7
  %v246 = vsub.s32 0, %v245
  %v247 = vrot.slane %v43, %v246
  %v249 = vadd.f32 %v235, %v247
  %v250 = vadd.f32 %v240, %v247
  %v252 = vlaneseq
  %v253 = vshrl.u32 %v252, 7
  %v254 = vsub.s32 0, %v253
  %v255 = vrot.slane %v41, %v254
  %v257 = vmul.f32 %v48, %v255
  %v258 = vmul.f32 %v53, %v255
  %v260 = vsel %vm70, %v38, 0
  %262 = vmatprep.subr.mxu0 0.0
  %263 = vmatpush1.msra.mxu0 0.0
  %264 = vmatprep.subr.mxu0 0.0
  %265 = vmatpush1.msra.mxu0 0.0
  %266 = vmatprep.subr.mxu0 0.0
  %267 = vmatpush1.msra.mxu0 0.0
  %268 = vmatprep.subr.mxu0 0.0
  %269 = vmatpush1.msra.mxu0 0.0
  %270 = vmatprep.subr.mxu0 0.0
  %271 = vmatpush1.msra.mxu0 0.0
  %272 = vmatprep.subr.mxu0 0.0
  %273 = vmatpush1.msra.mxu0 0.0
  %274 = vmatprep.subr.mxu0 0.0
  %275 = vmatpush1.msra.mxu0 0.0
  %276 = vmatprep.subr.mxu0 0.0
  %277 = vmatpush1.msra.mxu0 0.0
  %278 = vmatprep.subr.mxu0 0.0
  %279 = vmatpush1.msra.mxu0 0.0
  %280 = vmatprep.subr.mxu0 0.0
  %281 = vmatpush1.msra.mxu0 0.0
  %282 = vmatprep.subr.mxu0 0.0
  %283 = vmatpush1.msra.mxu0 0.0
  %284 = vmatprep.subr.mxu0 0.0
  %285 = vmatpush1.msra.mxu0 0.0
  %286 = vmatprep.subr.mxu0 0.0
  %287 = vmatpush1.msra.mxu0 0.0
  %288 = vmatprep.subr.mxu0 0.0
  %289 = vmatpush1.msra.mxu0 0.0
  %290 = vmatprep.subr.mxu0 0.0
  %291 = vmatpush1.msra.mxu0 0.0
  %292 = vmatprep.subr.mxu0 0.0
  %293 = vmatpush1.msra.mxu0 %v260
  %294 = vmatprep.subr.mxu0 0.0
  %295 = vmatpush2.msra.mxu0 0.0
  %296 = vmatprep.subr.mxu0 0.0
  %297 = vmatpush2.msra.mxu0 0.0
  %298 = vmatprep.subr.mxu0 0.0
  %299 = vmatpush2.msra.mxu0 0.0
  %300 = vmatprep.subr.mxu0 0.0
  %301 = vmatpush2.msra.mxu0 0.0
  %302 = vmatprep.subr.mxu0 0.0
  %303 = vmatpush2.msra.mxu0 0.0
  %304 = vmatprep.subr.mxu0 0.0
  %305 = vmatpush2.msra.mxu0 0.0
  %306 = vmatprep.subr.mxu0 0.0
  %307 = vmatpush2.msra.mxu0 0.0
  %308 = vmatprep.subr.mxu0 0.0
  %309 = vmatpush2.msra.mxu0 0.0
  %310 = vmatprep.subr.mxu0 0.0
  %311 = vmatpush2.msra.mxu0 0.0
  %312 = vmatprep.subr.mxu0 0.0
  %313 = vmatpush2.msra.mxu0 0.0
  %314 = vmatprep.subr.mxu0 0.0
  %315 = vmatpush2.msra.mxu0 0.0
  %316 = vmatprep.subr.mxu0 0.0
  %317 = vmatpush2.msra.mxu0 0.0
  %318 = vmatprep.subr.mxu0 0.0
  %319 = vmatpush2.msra.mxu0 0.0
  %320 = vmatprep.subr.mxu0 0.0
  %321 = vmatpush2.msra.mxu0 0.0
  %322 = vmatprep.subr.mxu0 0.0
  %323 = vmatpush2.msra.mxu0 0.0
  %324 = vmatprep.subr.mxu0 0.0
  %325 = vmatpush2.msra.mxu0 0.0
  %326 = vmatprep.mubr.f32.mxu0 0.0
  %327 = vmatmul.mubr.f32.gmra.mxu0 %v65
  %v328 = vpop.f32.mrf.mxu0
  %v329 = vadd.f32 %v257, %v328
  %v330 = vpop.f32.mrf.mxu0
  %331 = vmatprep.mubr.f32.mxu0 0.0
  %332 = vmatmul.mubr.f32.gmra.mxu0 %v68
  %v333 = vpop.f32.mrf.mxu0
  %v334 = vadd.f32 %v258, %v333
  %v335 = vpop.f32.mrf.mxu0
  %336 = vdwg.mxu0
  %v338 = vlaneseq
  %v339 = vshrl.u32 %v338, 7
  %v340 = vsub.s32 0, %v339
  %v341 = vrot.slane %v44, %v340
  %v343 = vadd.f32 %v329, %v341
  %v344 = vadd.f32 %v334, %v341
  %v345 = vld [vmem:[%s4] sm:$0xff]
  %v346 = vld [vmem:[%s4 + $0x8] sm:$0xff]
  %v347 = vld [vmem:[%s4 + $0x10] sm:$0xff]
  %v348 = vld [vmem:[%s4 + $0x18] sm:$0xff]
  %s349 = scalar_lea.vmem %s4, 32
  %v350 = vld [vmem:[%s349] sm:$0xff]
  %v351 = vld [vmem:[%s349 + $0x8] sm:$0xff]
  %v352 = vld [vmem:[%s349 + $0x10] sm:$0xff]
  %v353 = vld [vmem:[%s349 + $0x18] sm:$0xff]
  %s354 = scalar_lea.vmem %s4, 64
  %v355 = vld [vmem:[%s354] sm:$0xff]
  %v356 = vld [vmem:[%s354 + $0x8] sm:$0xff]
  %v357 = vld [vmem:[%s354 + $0x10] sm:$0xff]
  %v358 = vld [vmem:[%s354 + $0x18] sm:$0xff]
  %v359 = vld [vmem:[%s6] sm:$0x1]
  %v361 = vlaneseq
  %v362 = vshrl.u32 %v361, 7
  %v363 = vsub.s32 0, %v362
  %v364 = vrot.slane %v359, %v363
  %vm366 = vcmask 261120
  %v368 = vsel %vm366, 0.0, 0
  %370 = vmatprep.subr.mxu0 0.0
  %371 = vmatpush1.msra.mxu0 0.0
  %372 = vmatprep.subr.mxu0 0.0
  %373 = vmatpush1.msra.mxu0 0.0
  %374 = vmatprep.subr.mxu0 0.0
  %375 = vmatpush1.msra.mxu0 0.0
  %376 = vmatprep.subr.mxu0 0.0
  %377 = vmatpush1.msra.mxu0 0.0
  %378 = vmatprep.subr.mxu0 0.0
  %379 = vmatpush1.msra.mxu0 0.0
  %380 = vmatprep.subr.mxu0 0.0
  %381 = vmatpush1.msra.mxu0 0.0
  %382 = vmatprep.subr.mxu0 0.0
  %383 = vmatpush1.msra.mxu0 0.0
  %384 = vmatprep.subr.mxu0 0.0
  %385 = vmatpush1.msra.mxu0 0.0
  %386 = vmatprep.subr.mxu0 0.0
  %387 = vmatpush1.msra.mxu0 0.0
  %388 = vmatprep.subr.mxu0 0.0
  %389 = vmatpush1.msra.mxu0 0.0
  %390 = vmatprep.subr.mxu0 0.0
  %391 = vmatpush1.msra.mxu0 0.0
  %392 = vmatprep.subr.mxu0 0.0
  %393 = vmatpush1.msra.mxu0 0.0
  %394 = vmatprep.subr.mxu0 0.0
  %395 = vmatpush1.msra.mxu0 %v348
  %396 = vmatprep.subr.mxu0 0.0
  %397 = vmatpush1.msra.mxu0 %v347
  %398 = vmatprep.subr.mxu0 0.0
  %399 = vmatpush1.msra.mxu0 %v346
  %400 = vmatprep.subr.mxu0 0.0
  %401 = vmatpush1.msra.mxu0 %v345
  %402 = vmatprep.subr.mxu0 0.0
  %403 = vmatpush2.msra.mxu0 0.0
  %404 = vmatprep.subr.mxu0 0.0
  %405 = vmatpush2.msra.mxu0 0.0
  %406 = vmatprep.subr.mxu0 0.0
  %407 = vmatpush2.msra.mxu0 0.0
  %408 = vmatprep.subr.mxu0 0.0
  %409 = vmatpush2.msra.mxu0 0.0
  %410 = vmatprep.subr.mxu0 0.0
  %411 = vmatpush2.msra.mxu0 0.0
  %412 = vmatprep.subr.mxu0 0.0
  %413 = vmatpush2.msra.mxu0 0.0
  %414 = vmatprep.subr.mxu0 0.0
  %415 = vmatpush2.msra.mxu0 0.0
  %416 = vmatprep.subr.mxu0 0.0
  %417 = vmatpush2.msra.mxu0 0.0
  %418 = vmatprep.subr.mxu0 0.0
  %419 = vmatpush2.msra.mxu0 0.0
  %420 = vmatprep.subr.mxu0 0.0
  %421 = vmatpush2.msra.mxu0 0.0
  %422 = vmatprep.subr.mxu0 0.0
  %423 = vmatpush2.msra.mxu0 0.0
  %424 = vmatprep.subr.mxu0 0.0
  %425 = vmatpush2.msra.mxu0 0.0
  %426 = vmatprep.subr.mxu0 0.0
  %427 = vmatpush2.msra.mxu0 0.0
  %428 = vmatprep.subr.mxu0 0.0
  %429 = vmatpush2.msra.mxu0 0.0
  %430 = vmatprep.subr.mxu0 0.0
  %431 = vmatpush2.msra.mxu0 0.0
  %432 = vmatprep.subr.mxu0 0.0
  %433 = vmatpush2.msra.mxu0 0.0
  %434 = vmatprep.mubr.f32.mxu0 0.0
  %435 = vmatmul.mubr.f32.gmra.mxu0 %v368
  %v436 = vpop.f32.mrf.mxu0
  %v437 = vadd.f32 0.0, %v436
  %v438 = vpop.f32.mrf.mxu0
  %439 = vdwg.mxu0
  %440 = vmatprep.subr.mxu0 0.0
  %441 = vmatpush1.msra.mxu0 0.0
  %442 = vmatprep.subr.mxu0 0.0
  %443 = vmatpush1.msra.mxu0 0.0
  %444 = vmatprep.subr.mxu0 0.0
  %445 = vmatpush1.msra.mxu0 0.0
  %446 = vmatprep.subr.mxu0 0.0
  %447 = vmatpush1.msra.mxu0 0.0
  %448 = vmatprep.subr.mxu0 0.0
  %449 = vmatpush1.msra.mxu0 0.0
  %450 = vmatprep.subr.mxu0 0.0
  %451 = vmatpush1.msra.mxu0 0.0
  %452 = vmatprep.subr.mxu0 0.0
  %453 = vmatpush1.msra.mxu0 0.0
  %454 = vmatprep.subr.mxu0 0.0
  %455 = vmatpush1.msra.mxu0 0.0
  %456 = vmatprep.subr.mxu0 0.0
  %457 = vmatpush1.msra.mxu0 0.0
  %458 = vmatprep.subr.mxu0 0.0
  %459 = vmatpush1.msra.mxu0 0.0
  %460 = vmatprep.subr.mxu0 0.0
  %461 = vmatpush1.msra.mxu0 0.0
  %462 = vmatprep.subr.mxu0 0.0
  %463 = vmatpush1.msra.mxu0 0.0
  %464 = vmatprep.subr.mxu0 0.0
  %465 = vmatpush1.msra.mxu0 %v353
  %466 = vmatprep.subr.mxu0 0.0
  %467 = vmatpush1.msra.mxu0 %v352
  %468 = vmatprep.subr.mxu0 0.0
  %469 = vmatpush1.msra.mxu0 %v351
  %470 = vmatprep.subr.mxu0 0.0
  %471 = vmatpush1.msra.mxu0 %v350
  %472 = vmatprep.subr.mxu0 0.0
  %473 = vmatpush2.msra.mxu0 0.0
  %474 = vmatprep.subr.mxu0 0.0
  %475 = vmatpush2.msra.mxu0 0.0
  %476 = vmatprep.subr.mxu0 0.0
  %477 = vmatpush2.msra.mxu0 0.0
  %478 = vmatprep.subr.mxu0 0.0
  %479 = vmatpush2.msra.mxu0 0.0
  %480 = vmatprep.subr.mxu0 0.0
  %481 = vmatpush2.msra.mxu0 0.0
  %482 = vmatprep.subr.mxu0 0.0
  %483 = vmatpush2.msra.mxu0 0.0
  %484 = vmatprep.subr.mxu0 0.0
  %485 = vmatpush2.msra.mxu0 0.0
  %486 = vmatprep.subr.mxu0 0.0
  %487 = vmatpush2.msra.mxu0 0.0
  %488 = vmatprep.subr.mxu0 0.0
  %489 = vmatpush2.msra.mxu0 0.0
  %490 = vmatprep.subr.mxu0 0.0
  %491 = vmatpush2.msra.mxu0 0.0
  %492 = vmatprep.subr.mxu0 0.0
  %493 = vmatpush2.msra.mxu0 0.0
  %494 = vmatprep.subr.mxu0 0.0
  %495 = vmatpush2.msra.mxu0 0.0
  %496 = vmatprep.subr.mxu0 0.0
  %497 = vmatpush2.msra.mxu0 0.0
  %498 = vmatprep.subr.mxu0 0.0
  %499 = vmatpush2.msra.mxu0 0.0
  %500 = vmatprep.subr.mxu0 0.0
  %501 = vmatpush2.msra.mxu0 0.0
  %502 = vmatprep.subr.mxu0 0.0
  %503 = vmatpush2.msra.mxu0 0.0
  %504 = vmatprep.mubr.f32.mxu0 0.0
  %505 = vmatmul.mubr.f32.gmra.mxu0 %v368
  %v506 = vpop.f32.mrf.mxu0
  %v507 = vadd.f32 0.0, %v506
  %v508 = vpop.f32.mrf.mxu0
  %509 = vdwg.mxu0
  %v511 = vrot.slane %v437, 2
  %v513 = vadd.f32 %v156, %v511
  %v514 = vxor.u32 %v513, 2147483648
  %v515 = vmul.f32 %v514, 1.442695
  %v516 = vpow.pop %v515
  %v517 = vadd.f32 %v516, 1.0
  %v518 = vrcp.pop %v517
  %v519 = vmul.f32 1.0, %v518
  %v521 = vrot.slane %v507, 2
  %v523 = vadd.f32 %v250, %v521
  %v524 = vxor.u32 %v523, 2147483648
  %v525 = vmul.f32 %v524, 1.442695
  %v526 = vpow.pop %v525
  %v527 = vadd.f32 %v526, 1.0
  %v528 = vrcp.pop %v527
  %v529 = vmul.f32 1.0, %v528
  %530 = vmatprep.subr.mxu0 0.0
  %531 = vmatpush1.msra.mxu0 0.0
  %532 = vmatprep.subr.mxu0 0.0
  %533 = vmatpush1.msra.mxu0 0.0
  %534 = vmatprep.subr.mxu0 0.0
  %535 = vmatpush1.msra.mxu0 0.0
  %536 = vmatprep.subr.mxu0 0.0
  %537 = vmatpush1.msra.mxu0 0.0
  %538 = vmatprep.subr.mxu0 0.0
  %539 = vmatpush1.msra.mxu0 0.0
  %540 = vmatprep.subr.mxu0 0.0
  %541 = vmatpush1.msra.mxu0 0.0
  %542 = vmatprep.subr.mxu0 0.0
  %543 = vmatpush1.msra.mxu0 0.0
  %544 = vmatprep.subr.mxu0 0.0
  %545 = vmatpush1.msra.mxu0 0.0
  %546 = vmatprep.subr.mxu0 0.0
  %547 = vmatpush1.msra.mxu0 0.0
  %548 = vmatprep.subr.mxu0 0.0
  %549 = vmatpush1.msra.mxu0 0.0
  %550 = vmatprep.subr.mxu0 0.0
  %551 = vmatpush1.msra.mxu0 0.0
  %552 = vmatprep.subr.mxu0 0.0
  %553 = vmatpush1.msra.mxu0 0.0
  %554 = vmatprep.subr.mxu0 0.0
  %555 = vmatpush1.msra.mxu0 %v358
  %556 = vmatprep.subr.mxu0 0.0
  %557 = vmatpush1.msra.mxu0 %v357
  %558 = vmatprep.subr.mxu0 0.0
  %559 = vmatpush1.msra.mxu0 %v356
  %560 = vmatprep.subr.mxu0 0.0
  %561 = vmatpush1.msra.mxu0 %v355
  %562 = vmatprep.subr.mxu0 0.0
  %563 = vmatpush2.msra.mxu0 0.0
  %564 = vmatprep.subr.mxu0 0.0
  %565 = vmatpush2.msra.mxu0 0.0
  %566 = vmatprep.subr.mxu0 0.0
  %567 = vmatpush2.msra.mxu0 0.0
  %568 = vmatprep.subr.mxu0 0.0
  %569 = vmatpush2.msra.mxu0 0.0
  %570 = vmatprep.subr.mxu0 0.0
  %571 = vmatpush2.msra.mxu0 0.0
  %572 = vmatprep.subr.mxu0 0.0
  %573 = vmatpush2.msra.mxu0 0.0
  %574 = vmatprep.subr.mxu0 0.0
  %575 = vmatpush2.msra.mxu0 0.0
  %576 = vmatprep.subr.mxu0 0.0
  %577 = vmatpush2.msra.mxu0 0.0
  %578 = vmatprep.subr.mxu0 0.0
  %579 = vmatpush2.msra.mxu0 0.0
  %580 = vmatprep.subr.mxu0 0.0
  %581 = vmatpush2.msra.mxu0 0.0
  %582 = vmatprep.subr.mxu0 0.0
  %583 = vmatpush2.msra.mxu0 0.0
  %584 = vmatprep.subr.mxu0 0.0
  %585 = vmatpush2.msra.mxu0 0.0
  %586 = vmatprep.subr.mxu0 0.0
  %587 = vmatpush2.msra.mxu0 0.0
  %588 = vmatprep.subr.mxu0 0.0
  %589 = vmatpush2.msra.mxu0 0.0
  %590 = vmatprep.subr.mxu0 0.0
  %591 = vmatpush2.msra.mxu0 0.0
  %592 = vmatprep.subr.mxu0 0.0
  %593 = vmatpush2.msra.mxu0 0.0
  %594 = vmatprep.mubr.f32.mxu0 0.0
  %595 = vmatmul.mubr.f32.gmra.mxu0 %v368
  %v596 = vpop.f32.mrf.mxu0
  %v597 = vadd.f32 %v364, %v596
  %v598 = vpop.f32.mrf.mxu0
  %599 = vdwg.mxu0
  %v601 = vrot.slane %v597, 2
  %v603 = vmul.f32 %v519, %v601
  %v604 = vadd.f32 %v344, %v603
  %v605 = vtanh.pop %v604
  %v606 = vsub.f32 1.0, %v529
  %v607 = vmul.f32 %v606, %v605
  %v608 = vmul.f32 %v529, 0.0
  %v609 = vadd.f32 %v607, %v608
  %v611 = vrot.slane %v609, 6
  %v612 = vsel %vm366, %v611, 0
  %614 = vmatprep.subr.mxu0 0.0
  %615 = vmatpush1.msra.mxu0 0.0
  %616 = vmatprep.subr.mxu0 0.0
  %617 = vmatpush1.msra.mxu0 0.0
  %618 = vmatprep.subr.mxu0 0.0
  %619 = vmatpush1.msra.mxu0 0.0
  %620 = vmatprep.subr.mxu0 0.0
  %621 = vmatpush1.msra.mxu0 0.0
  %622 = vmatprep.subr.mxu0 0.0
  %623 = vmatpush1.msra.mxu0 0.0
  %624 = vmatprep.subr.mxu0 0.0
  %625 = vmatpush1.msra.mxu0 0.0
  %626 = vmatprep.subr.mxu0 0.0
  %627 = vmatpush1.msra.mxu0 0.0
  %628 = vmatprep.subr.mxu0 0.0
  %629 = vmatpush1.msra.mxu0 0.0
  %630 = vmatprep.subr.mxu0 0.0
  %631 = vmatpush1.msra.mxu0 0.0
  %632 = vmatprep.subr.mxu0 0.0
  %633 = vmatpush1.msra.mxu0 0.0
  %634 = vmatprep.subr.mxu0 0.0
  %635 = vmatpush1.msra.mxu0 0.0
  %636 = vmatprep.subr.mxu0 0.0
  %637 = vmatpush1.msra.mxu0 0.0
  %638 = vmatprep.subr.mxu0 0.0
  %639 = vmatpush1.msra.mxu0 %v348
  %640 = vmatprep.subr.mxu0 0.0
  %641 = vmatpush1.msra.mxu0 %v347
  %642 = vmatprep.subr.mxu0 0.0
  %643 = vmatpush1.msra.mxu0 %v346
  %644 = vmatprep.subr.mxu0 0.0
  %645 = vmatpush1.msra.mxu0 %v345
  %646 = vmatprep.subr.mxu0 0.0
  %647 = vmatpush2.msra.mxu0 0.0
  %648 = vmatprep.subr.mxu0 0.0
  %649 = vmatpush2.msra.mxu0 0.0
  %650 = vmatprep.subr.mxu0 0.0
  %651 = vmatpush2.msra.mxu0 0.0
  %652 = vmatprep.subr.mxu0 0.0
  %653 = vmatpush2.msra.mxu0 0.0
  %654 = vmatprep.subr.mxu0 0.0
  %655 = vmatpush2.msra.mxu0 0.0
  %656 = vmatprep.subr.mxu0 0.0
  %657 = vmatpush2.msra.mxu0 0.0
  %658 = vmatprep.subr.mxu0 0.0
  %659 = vmatpush2.msra.mxu0 0.0
  %660 = vmatprep.subr.mxu0 0.0
  %661 = vmatpush2.msra.mxu0 0.0
  %662 = vmatprep.subr.mxu0 0.0
  %663 = vmatpush2.msra.mxu0 0.0
  %664 = vmatprep.subr.mxu0 0.0
  %665 = vmatpush2.msra.mxu0 0.0
  %666 = vmatprep.subr.mxu0 0.0
  %667 = vmatpush2.msra.mxu0 0.0
  %668 = vmatprep.subr.mxu0 0.0
  %669 = vmatpush2.msra.mxu0 0.0
  %670 = vmatprep.subr.mxu0 0.0
  %671 = vmatpush2.msra.mxu0 0.0
  %672 = vmatprep.subr.mxu0 0.0
  %673 = vmatpush2.msra.mxu0 0.0
  %674 = vmatprep.subr.mxu0 0.0
  %675 = vmatpush2.msra.mxu0 0.0
  %676 = vmatprep.subr.mxu0 0.0
  %677 = vmatpush2.msra.mxu0 0.0
  %678 = vmatprep.mubr.f32.mxu0 0.0
  %679 = vmatmul.mubr.f32.gmra.mxu0 %v612
  %v680 = vpop.f32.mrf.mxu0
  %v681 = vadd.f32 0.0, %v680
  %v682 = vpop.f32.mrf.mxu0
  %683 = vdwg.mxu0
  %684 = vmatprep.subr.mxu0 0.0
  %685 = vmatpush1.msra.mxu0 0.0
  %686 = vmatprep.subr.mxu0 0.0
  %687 = vmatpush1.msra.mxu0 0.0
  %688 = vmatprep.subr.mxu0 0.0
  %689 = vmatpush1.msra.mxu0 0.0
  %690 = vmatprep.subr.mxu0 0.0
  %691 = vmatpush1.msra.mxu0 0.0
  %692 = vmatprep.subr.mxu0 0.0
  %693 = vmatpush1.msra.mxu0 0.0
  %694 = vmatprep.subr.mxu0 0.0
  %695 = vmatpush1.msra.mxu0 0.0
  %696 = vmatprep.subr.mxu0 0.0
  %697 = vmatpush1.msra.mxu0 0.0
  %698 = vmatprep.subr.mxu0 0.0
  %699 = vmatpush1.msra.mxu0 0.0
  %700 = vmatprep.subr.mxu0 0.0
  %701 = vmatpush1.msra.mxu0 0.0
  %702 = vmatprep.subr.mxu0 0.0
  %703 = vmatpush1.msra.mxu0 0.0
  %704 = vmatprep.subr.mxu0 0.0
  %705 = vmatpush1.msra.mxu0 0.0
  %706 = vmatprep.subr.mxu0 0.0
  %707 = vmatpush1.msra.mxu0 0.0
  %708 = vmatprep.subr.mxu0 0.0
  %709 = vmatpush1.msra.mxu0 %v353
  %710 = vmatprep.subr.mxu0 0.0
  %711 = vmatpush1.msra.mxu0 %v352
  %712 = vmatprep.subr.mxu0 0.0
  %713 = vmatpush1.msra.mxu0 %v351
  %714 = vmatprep.subr.mxu0 0.0
  %715 = vmatpush1.msra.mxu0 %v350
  %716 = vmatprep.subr.mxu0 0.0
  %717 = vmatpush2.msra.mxu0 0.0
  %718 = vmatprep.subr.mxu0 0.0
  %719 = vmatpush2.msra.mxu0 0.0
  %720 = vmatprep.subr.mxu0 0.0
  %721 = vmatpush2.msra.mxu0 0.0
  %722 = vmatprep.subr.mxu0 0.0
  %723 = vmatpush2.msra.mxu0 0.0
  %724 = vmatprep.subr.mxu0 0.0
  %725 = vmatpush2.msra.mxu0 0.0
  %726 = vmatprep.subr.mxu0 0.0
  %727 = vmatpush2.msra.mxu0 0.0
  %728 = vmatprep.subr.mxu0 0.0
  %729 = vmatpush2.msra.mxu0 0.0
  %730 = vmatprep.subr.mxu0 0.0
  %731 = vmatpush2.msra.mxu0 0.0
  %732 = vmatprep.subr.mxu0 0.0
  %733 = vmatpush2.msra.mxu0 0.0
  %734 = vmatprep.subr.mxu0 0.0
  %735 = vmatpush2.msra.mxu0 0.0
  %736 = vmatprep.subr.mxu0 0.0
  %737 = vmatpush2.msra.mxu0 0.0
  %738 = vmatprep.subr.mxu0 0.0
  %739 = vmatpush2.msra.mxu0 0.0
  %740 = vmatprep.subr.mxu0 0.0
  %741 = vmatpush2.msra.mxu0 0.0
  %742 = vmatprep.subr.mxu0 0.0
  %743 = vmatpush2.msra.mxu0 0.0
  %744 = vmatprep.subr.mxu0 0.0
  %745 = vmatpush2.msra.mxu0 0.0
  %746 = vmatprep.subr.mxu0 0.0
  %747 = vmatpush2.msra.mxu0 0.0
  %748 = vmatprep.mubr.f32.mxu0 0.0
  %749 = vmatmul.mubr.f32.gmra.mxu0 %v612
  %v750 = vpop.f32.mrf.mxu0
  %v751 = vadd.f32 0.0, %v750
  %v752 = vpop.f32.mrf.mxu0
  %753 = vdwg.mxu0
  %v755 = vrot.slane %v681, 4
  %v757 = vadd.f32 %v156, %v755
  %v758 = vxor.u32 %v757, 2147483648
  %v759 = vmul.f32 %v758, 1.442695
  %v760 = vpow.pop %v759
  %v761 = vadd.f32 %v760, 1.0
  %v762 = vrcp.pop %v761
  %v763 = vmul.f32 1.0, %v762
  %v765 = vrot.slane %v751, 4
  %v767 = vadd.f32 %v250, %v765
  %v768 = vxor.u32 %v767, 2147483648
  %v769 = vmul.f32 %v768, 1.442695
  %v770 = vpow.pop %v769
  %v771 = vadd.f32 %v770, 1.0
  %v772 = vrcp.pop %v771
  %v773 = vmul.f32 1.0, %v772
  %774 = vmatprep.subr.mxu0 0.0
  %775 = vmatpush1.msra.mxu0 0.0
  %776 = vmatprep.subr.mxu0 0.0
  %777 = vmatpush1.msra.mxu0 0.0
  %778 = vmatprep.subr.mxu0 0.0
  %779 = vmatpush1.msra.mxu0 0.0
  %780 = vmatprep.subr.mxu0 0.0
  %781 = vmatpush1.msra.mxu0 0.0
  %782 = vmatprep.subr.mxu0 0.0
  %783 = vmatpush1.msra.mxu0 0.0
  %784 = vmatprep.subr.mxu0 0.0
  %785 = vmatpush1.msra.mxu0 0.0
  %786 = vmatprep.subr.mxu0 0.0
  %787 = vmatpush1.msra.mxu0 0.0
  %788 = vmatprep.subr.mxu0 0.0
  %789 = vmatpush1.msra.mxu0 0.0
  %790 = vmatprep.subr.mxu0 0.0
  %791 = vmatpush1.msra.mxu0 0.0
  %792 = vmatprep.subr.mxu0 0.0
  %793 = vmatpush1.msra.mxu0 0.0
  %794 = vmatprep.subr.mxu0 0.0
  %795 = vmatpush1.msra.mxu0 0.0
  %796 = vmatprep.subr.mxu0 0.0
  %797 = vmatpush1.msra.mxu0 0.0
  %798 = vmatprep.subr.mxu0 0.0
  %799 = vmatpush1.msra.mxu0 %v358
  %800 = vmatprep.subr.mxu0 0.0
  %801 = vmatpush1.msra.mxu0 %v357
  %802 = vmatprep.subr.mxu0 0.0
  %803 = vmatpush1.msra.mxu0 %v356
  %804 = vmatprep.subr.mxu0 0.0
  %805 = vmatpush1.msra.mxu0 %v355
  %806 = vmatprep.subr.mxu0 0.0
  %807 = vmatpush2.msra.mxu0 0.0
  %808 = vmatprep.subr.mxu0 0.0
  %809 = vmatpush2.msra.mxu0 0.0
  %810 = vmatprep.subr.mxu0 0.0
  %811 = vmatpush2.msra.mxu0 0.0
  %812 = vmatprep.subr.mxu0 0.0
  %813 = vmatpush2.msra.mxu0 0.0
  %814 = vmatprep.subr.mxu0 0.0
  %815 = vmatpush2.msra.mxu0 0.0
  %816 = vmatprep.subr.mxu0 0.0
  %817 = vmatpush2.msra.mxu0 0.0
  %818 = vmatprep.subr.mxu0 0.0
  %819 = vmatpush2.msra.mxu0 0.0
  %820 = vmatprep.subr.mxu0 0.0
  %821 = vmatpush2.msra.mxu0 0.0
  %822 = vmatprep.subr.mxu0 0.0
  %823 = vmatpush2.msra.mxu0 0.0
  %824 = vmatprep.subr.mxu0 0.0
  %825 = vmatpush2.msra.mxu0 0.0
  %826 = vmatprep.subr.mxu0 0.0
  %827 = vmatpush2.msra.mxu0 0.0
  %828 = vmatprep.subr.mxu0 0.0
  %829 = vmatpush2.msra.mxu0 0.0
  %830 = vmatprep.subr.mxu0 0.0
  %831 = vmatpush2.msra.mxu0 0.0
  %832 = vmatprep.subr.mxu0 0.0
  %833 = vmatpush2.msra.mxu0 0.0
  %834 = vmatprep.subr.mxu0 0.0
  %835 = vmatpush2.msra.mxu0 0.0
  %836 = vmatprep.subr.mxu0 0.0
  %837 = vmatpush2.msra.mxu0 0.0
  %838 = vmatprep.mubr.f32.mxu0 0.0
  %839 = vmatmul.mubr.f32.gmra.mxu0 %v612
  %v840 = vpop.f32.mrf.mxu0
  %v841 = vadd.f32 %v364, %v840
  %v842 = vpop.f32.mrf.mxu0
  %843 = vdwg.mxu0
  %v845 = vrot.slane %v841, 4
  %v847 = vmul.f32 %v763, %v845
  %v848 = vadd.f32 %v344, %v847
  %v849 = vtanh.pop %v848
  %v850 = vsub.f32 1.0, %v773
  %v851 = vmul.f32 %v850, %v849
  %v852 = vrot.slane %v609, 2
  %v854 = vmul.f32 %v773, %v852
  %v855 = vadd.f32 %v851, %v854
  %v857 = vrot.slane %v855, 4
  %v858 = vsel %vm366, %v857, 0
  %860 = vmatprep.subr.mxu0 0.0
  %861 = vmatpush1.msra.mxu0 0.0
  %862 = vmatprep.subr.mxu0 0.0
  %863 = vmatpush1.msra.mxu0 0.0
  %864 = vmatprep.subr.mxu0 0.0
  %865 = vmatpush1.msra.mxu0 0.0
  %866 = vmatprep.subr.mxu0 0.0
  %867 = vmatpush1.msra.mxu0 0.0
  %868 = vmatprep.subr.mxu0 0.0
  %869 = vmatpush1.msra.mxu0 0.0
  %870 = vmatprep.subr.mxu0 0.0
  %871 = vmatpush1.msra.mxu0 0.0
  %872 = vmatprep.subr.mxu0 0.0
  %873 = vmatpush1.msra.mxu0 0.0
  %874 = vmatprep.subr.mxu0 0.0
  %875 = vmatpush1.msra.mxu0 0.0
  %876 = vmatprep.subr.mxu0 0.0
  %877 = vmatpush1.msra.mxu0 0.0
  %878 = vmatprep.subr.mxu0 0.0
  %879 = vmatpush1.msra.mxu0 0.0
  %880 = vmatprep.subr.mxu0 0.0
  %881 = vmatpush1.msra.mxu0 0.0
  %882 = vmatprep.subr.mxu0 0.0
  %883 = vmatpush1.msra.mxu0 0.0
  %884 = vmatprep.subr.mxu0 0.0
  %885 = vmatpush1.msra.mxu0 %v348
  %886 = vmatprep.subr.mxu0 0.0
  %887 = vmatpush1.msra.mxu0 %v347
  %888 = vmatprep.subr.mxu0 0.0
  %889 = vmatpush1.msra.mxu0 %v346
  %890 = vmatprep.subr.mxu0 0.0
  %891 = vmatpush1.msra.mxu0 %v345
  %892 = vmatprep.subr.mxu0 0.0
  %893 = vmatpush2.msra.mxu0 0.0
  %894 = vmatprep.subr.mxu0 0.0
  %895 = vmatpush2.msra.mxu0 0.0
  %896 = vmatprep.subr.mxu0 0.0
  %897 = vmatpush2.msra.mxu0 0.0
  %898 = vmatprep.subr.mxu0 0.0
  %899 = vmatpush2.msra.mxu0 0.0
  %900 = vmatprep.subr.mxu0 0.0
  %901 = vmatpush2.msra.mxu0 0.0
  %902 = vmatprep.subr.mxu0 0.0
  %903 = vmatpush2.msra.mxu0 0.0
  %904 = vmatprep.subr.mxu0 0.0
  %905 = vmatpush2.msra.mxu0 0.0
  %906 = vmatprep.subr.mxu0 0.0
  %907 = vmatpush2.msra.mxu0 0.0
  %908 = vmatprep.subr.mxu0 0.0
  %909 = vmatpush2.msra.mxu0 0.0
  %910 = vmatprep.subr.mxu0 0.0
  %911 = vmatpush2.msra.mxu0 0.0
  %912 = vmatprep.subr.mxu0 0.0
  %913 = vmatpush2.msra.mxu0 0.0
  %914 = vmatprep.subr.mxu0 0.0
  %915 = vmatpush2.msra.mxu0 0.0
  %916 = vmatprep.subr.mxu0 0.0
  %917 = vmatpush2.msra.mxu0 0.0
  %918 = vmatprep.subr.mxu0 0.0
  %919 = vmatpush2.msra.mxu0 0.0
  %920 = vmatprep.subr.mxu0 0.0
  %921 = vmatpush2.msra.mxu0 0.0
  %922 = vmatprep.subr.mxu0 0.0
  %923 = vmatpush2.msra.mxu0 0.0
  %924 = vmatprep.mubr.f32.mxu0 0.0
  %925 = vmatmul.mubr.f32.gmra.mxu0 %v858
  %v926 = vpop.f32.mrf.mxu0
  %v927 = vadd.f32 0.0, %v926
  %v928 = vpop.f32.mrf.mxu0
  %929 = vdwg.mxu0
  %930 = vmatprep.subr.mxu0 0.0
  %931 = vmatpush1.msra.mxu0 0.0
  %932 = vmatprep.subr.mxu0 0.0
  %933 = vmatpush1.msra.mxu0 0.0
  %934 = vmatprep.subr.mxu0 0.0
  %935 = vmatpush1.msra.mxu0 0.0
  %936 = vmatprep.subr.mxu0 0.0
  %937 = vmatpush1.msra.mxu0 0.0
  %938 = vmatprep.subr.mxu0 0.0
  %939 = vmatpush1.msra.mxu0 0.0
  %940 = vmatprep.subr.mxu0 0.0
  %941 = vmatpush1.msra.mxu0 0.0
  %942 = vmatprep.subr.mxu0 0.0
  %943 = vmatpush1.msra.mxu0 0.0
  %944 = vmatprep.subr.mxu0 0.0
  %945 = vmatpush1.msra.mxu0 0.0
  %946 = vmatprep.subr.mxu0 0.0
  %947 = vmatpush1.msra.mxu0 0.0
  %948 = vmatprep.subr.mxu0 0.0
  %949 = vmatpush1.msra.mxu0 0.0
  %950 = vmatprep.subr.mxu0 0.0
  %951 = vmatpush1.msra.mxu0 0.0
  %952 = vmatprep.subr.mxu0 0.0
  %953 = vmatpush1.msra.mxu0 0.0
  %954 = vmatprep.subr.mxu0 0.0
  %955 = vmatpush1.msra.mxu0 %v353
  %956 = vmatprep.subr.mxu0 0.0
  %957 = vmatpush1.msra.mxu0 %v352
  %958 = vmatprep.subr.mxu0 0.0
  %959 = vmatpush1.msra.mxu0 %v351
  %960 = vmatprep.subr.mxu0 0.0
  %961 = vmatpush1.msra.mxu0 %v350
  %962 = vmatprep.subr.mxu0 0.0
  %963 = vmatpush2.msra.mxu0 0.0
  %964 = vmatprep.subr.mxu0 0.0
  %965 = vmatpush2.msra.mxu0 0.0
  %966 = vmatprep.subr.mxu0 0.0
  %967 = vmatpush2.msra.mxu0 0.0
  %968 = vmatprep.subr.mxu0 0.0
  %969 = vmatpush2.msra.mxu0 0.0
  %970 = vmatprep.subr.mxu0 0.0
  %971 = vmatpush2.msra.mxu0 0.0
  %972 = vmatprep.subr.mxu0 0.0
  %973 = vmatpush2.msra.mxu0 0.0
  %974 = vmatprep.subr.mxu0 0.0
  %975 = vmatpush2.msra.mxu0 0.0
  %976 = vmatprep.subr.mxu0 0.0
  %977 = vmatpush2.msra.mxu0 0.0
  %978 = vmatprep.subr.mxu0 0.0
  %979 = vmatpush2.msra.mxu0 0.0
  %980 = vmatprep.subr.mxu0 0.0
  %981 = vmatpush2.msra.mxu0 0.0
  %982 = vmatprep.subr.mxu0 0.0
  %983 = vmatpush2.msra.mxu0 0.0
  %984 = vmatprep.subr.mxu0 0.0
  %985 = vmatpush2.msra.mxu0 0.0
  %986 = vmatprep.subr.mxu0 0.0
  %987 = vmatpush2.msra.mxu0 0.0
  %988 = vmatprep.subr.mxu0 0.0
  %989 = vmatpush2.msra.mxu0 0.0
  %990 = vmatprep.subr.mxu0 0.0
  %991 = vmatpush2.msra.mxu0 0.0
  %992 = vmatprep.subr.mxu0 0.0
  %993 = vmatpush2.msra.mxu0 0.0
  %994 = vmatprep.mubr.f32.mxu0 0.0
  %995 = vmatmul.mubr.f32.gmra.mxu0 %v858
  %v996 = vpop.f32.mrf.mxu0
  %v997 = vadd.f32 0.0, %v996
  %v998 = vpop.f32.mrf.mxu0
  %999 = vdwg.mxu0
  %v1001 = vrot.slane %v927, 6
  %v1003 = vadd.f32 %v156, %v1001
  %v1004 = vxor.u32 %v1003, 2147483648
  %v1005 = vmul.f32 %v1004, 1.442695
  %v1006 = vpow.pop %v1005
  %v1007 = vadd.f32 %v1006, 1.0
  %v1008 = vrcp.pop %v1007
  %v1009 = vmul.f32 1.0, %v1008
  %v1011 = vrot.slane %v997, 6
  %v1013 = vadd.f32 %v250, %v1011
  %v1014 = vxor.u32 %v1013, 2147483648
  %v1015 = vmul.f32 %v1014, 1.442695
  %v1016 = vpow.pop %v1015
  %v1017 = vadd.f32 %v1016, 1.0
  %v1018 = vrcp.pop %v1017
  %v1019 = vmul.f32 1.0, %v1018
  %1020 = vmatprep.subr.mxu0 0.0
  %1021 = vmatpush1.msra.mxu0 0.0
  %1022 = vmatprep.subr.mxu0 0.0
  %1023 = vmatpush1.msra.mxu0 0.0
  %1024 = vmatprep.subr.mxu0 0.0
  %1025 = vmatpush1.msra.mxu0 0.0
  %1026 = vmatprep.subr.mxu0 0.0
  %1027 = vmatpush1.msra.mxu0 0.0
  %1028 = vmatprep.subr.mxu0 0.0
  %1029 = vmatpush1.msra.mxu0 0.0
  %1030 = vmatprep.subr.mxu0 0.0
  %1031 = vmatpush1.msra.mxu0 0.0
  %1032 = vmatprep.subr.mxu0 0.0
  %1033 = vmatpush1.msra.mxu0 0.0
  %1034 = vmatprep.subr.mxu0 0.0
  %1035 = vmatpush1.msra.mxu0 0.0
  %1036 = vmatprep.subr.mxu0 0.0
  %1037 = vmatpush1.msra.mxu0 0.0
  %1038 = vmatprep.subr.mxu0 0.0
  %1039 = vmatpush1.msra.mxu0 0.0
  %1040 = vmatprep.subr.mxu0 0.0
  %1041 = vmatpush1.msra.mxu0 0.0
  %1042 = vmatprep.subr.mxu0 0.0
  %1043 = vmatpush1.msra.mxu0 0.0
  %1044 = vmatprep.subr.mxu0 0.0
  %1045 = vmatpush1.msra.mxu0 %v358
  %1046 = vmatprep.subr.mxu0 0.0
  %1047 = vmatpush1.msra.mxu0 %v357
  %1048 = vmatprep.subr.mxu0 0.0
  %1049 = vmatpush1.msra.mxu0 %v356
  %1050 = vmatprep.subr.mxu0 0.0
  %1051 = vmatpush1.msra.mxu0 %v355
  %1052 = vmatprep.subr.mxu0 0.0
  %1053 = vmatpush2.msra.mxu0 0.0
  %1054 = vmatprep.subr.mxu0 0.0
  %1055 = vmatpush2.msra.mxu0 0.0
  %1056 = vmatprep.subr.mxu0 0.0
  %1057 = vmatpush2.msra.mxu0 0.0
  %1058 = vmatprep.subr.mxu0 0.0
  %1059 = vmatpush2.msra.mxu0 0.0
  %1060 = vmatprep.subr.mxu0 0.0
  %1061 = vmatpush2.msra.mxu0 0.0
  %1062 = vmatprep.subr.mxu0 0.0
  %1063 = vmatpush2.msra.mxu0 0.0
  %1064 = vmatprep.subr.mxu0 0.0
  %1065 = vmatpush2.msra.mxu0 0.0
  %1066 = vmatprep.subr.mxu0 0.0
  %1067 = vmatpush2.msra.mxu0 0.0
  %1068 = vmatprep.subr.mxu0 0.0
  %1069 = vmatpush2.msra.mxu0 0.0
  %1070 = vmatprep.subr.mxu0 0.0
  %1071 = vmatpush2.msra.mxu0 0.0
  %1072 = vmatprep.subr.mxu0 0.0
  %1073 = vmatpush2.msra.mxu0 0.0
  %1074 = vmatprep.subr.mxu0 0.0
  %1075 = vmatpush2.msra.mxu0 0.0
  %1076 = vmatprep.subr.mxu0 0.0
  %1077 = vmatpush2.msra.mxu0 0.0
  %1078 = vmatprep.subr.mxu0 0.0
  %1079 = vmatpush2.msra.mxu0 0.0
  %1080 = vmatprep.subr.mxu0 0.0
  %1081 = vmatpush2.msra.mxu0 0.0
  %1082 = vmatprep.subr.mxu0 0.0
  %1083 = vmatpush2.msra.mxu0 0.0
  %1084 = vmatprep.mubr.f32.mxu0 0.0
  %1085 = vmatmul.mubr.f32.gmra.mxu0 %v858
  %v1086 = vpop.f32.mrf.mxu0
  %v1087 = vadd.f32 %v364, %v1086
  %v1088 = vpop.f32.mrf.mxu0
  %1089 = vdwg.mxu0
  %v1091 = vrot.slane %v1087, 6
  %v1093 = vmul.f32 %v1009, %v1091
  %v1094 = vadd.f32 %v344, %v1093
  %v1095 = vtanh.pop %v1094
  %v1096 = vsub.f32 1.0, %v1019
  %v1097 = vmul.f32 %v1096, %v1095
  %v1098 = vrot.slane %v855, 2
  %v1100 = vmul.f32 %v1019, %v1098
  %v1101 = vadd.f32 %v1097, %v1100
  %v1103 = vrot.slane %v1101, 2
  %v1104 = vsel %vm366, %v1103, 0
  %1106 = vmatprep.subr.mxu0 0.0
  %1107 = vmatpush1.msra.mxu0 0.0
  %1108 = vmatprep.subr.mxu0 0.0
  %1109 = vmatpush1.msra.mxu0 0.0
  %1110 = vmatprep.subr.mxu0 0.0
  %1111 = vmatpush1.msra.mxu0 0.0
  %1112 = vmatprep.subr.mxu0 0.0
  %1113 = vmatpush1.msra.mxu0 0.0
  %1114 = vmatprep.subr.mxu0 0.0
  %1115 = vmatpush1.msra.mxu0 0.0
  %1116 = vmatprep.subr.mxu0 0.0
  %1117 = vmatpush1.msra.mxu0 0.0
  %1118 = vmatprep.subr.mxu0 0.0
  %1119 = vmatpush1.msra.mxu0 0.0
  %1120 = vmatprep.subr.mxu0 0.0
  %1121 = vmatpush1.msra.mxu0 0.0
  %1122 = vmatprep.subr.mxu0 0.0
  %1123 = vmatpush1.msra.mxu0 0.0
  %1124 = vmatprep.subr.mxu0 0.0
  %1125 = vmatpush1.msra.mxu0 0.0
  %1126 = vmatprep.subr.mxu0 0.0
  %1127 = vmatpush1.msra.mxu0 0.0
  %1128 = vmatprep.subr.mxu0 0.0
  %1129 = vmatpush1.msra.mxu0 0.0
  %1130 = vmatprep.subr.mxu0 0.0
  %1131 = vmatpush1.msra.mxu0 %v348
  %1132 = vmatprep.subr.mxu0 0.0
  %1133 = vmatpush1.msra.mxu0 %v347
  %1134 = vmatprep.subr.mxu0 0.0
  %1135 = vmatpush1.msra.mxu0 %v346
  %1136 = vmatprep.subr.mxu0 0.0
  %1137 = vmatpush1.msra.mxu0 %v345
  %1138 = vmatprep.subr.mxu0 0.0
  %1139 = vmatpush2.msra.mxu0 0.0
  %1140 = vmatprep.subr.mxu0 0.0
  %1141 = vmatpush2.msra.mxu0 0.0
  %1142 = vmatprep.subr.mxu0 0.0
  %1143 = vmatpush2.msra.mxu0 0.0
  %1144 = vmatprep.subr.mxu0 0.0
  %1145 = vmatpush2.msra.mxu0 0.0
  %1146 = vmatprep.subr.mxu0 0.0
  %1147 = vmatpush2.msra.mxu0 0.0
  %1148 = vmatprep.subr.mxu0 0.0
  %1149 = vmatpush2.msra.mxu0 0.0
  %1150 = vmatprep.subr.mxu0 0.0
  %1151 = vmatpush2.msra.mxu0 0.0
  %1152 = vmatprep.subr.mxu0 0.0
  %1153 = vmatpush2.msra.mxu0 0.0
  %1154 = vmatprep.subr.mxu0 0.0
  %1155 = vmatpush2.msra.mxu0 0.0
  %1156 = vmatprep.subr.mxu0 0.0
  %1157 = vmatpush2.msra.mxu0 0.0
  %1158 = vmatprep.subr.mxu0 0.0
  %1159 = vmatpush2.msra.mxu0 0.0
  %1160 = vmatprep.subr.mxu0 0.0
  %1161 = vmatpush2.msra.mxu0 0.0
  %1162 = vmatprep.subr.mxu0 0.0
  %1163 = vmatpush2.msra.mxu0 0.0
  %1164 = vmatprep.subr.mxu0 0.0
  %1165 = vmatpush2.msra.mxu0 0.0
  %1166 = vmatprep.subr.mxu0 0.0
  %1167 = vmatpush2.msra.mxu0 0.0
  %1168 = vmatprep.subr.mxu0 0.0
  %1169 = vmatpush2.msra.mxu0 0.0
  %1170 = vmatprep.mubr.f32.mxu0 0.0
  %1171 = vmatmul.mubr.f32.gmra.mxu0 %v1104
  %v1172 = vpop.f32.mrf.mxu0
  %v1173 = vadd.f32 0.0, %v1172
  %v1174 = vpop.f32.mrf.mxu0
  %1175 = vdwg.mxu0
  %1176 = vmatprep.subr.mxu0 0.0
  %1177 = vmatpush1.msra.mxu0 0.0
  %1178 = vmatprep.subr.mxu0 0.0
  %1179 = vmatpush1.msra.mxu0 0.0
  %1180 = vmatprep.subr.mxu0 0.0
  %1181 = vmatpush1.msra.mxu0 0.0
  %1182 = vmatprep.subr.mxu0 0.0
  %1183 = vmatpush1.msra.mxu0 0.0
  %1184 = vmatprep.subr.mxu0 0.0
  %1185 = vmatpush1.msra.mxu0 0.0
  %1186 = vmatprep.subr.mxu0 0.0
  %1187 = vmatpush1.msra.mxu0 0.0
  %1188 = vmatprep.subr.mxu0 0.0
  %1189 = vmatpush1.msra.mxu0 0.0
  %1190 = vmatprep.subr.mxu0 0.0
  %1191 = vmatpush1.msra.mxu0 0.0
  %1192 = vmatprep.subr.mxu0 0.0
  %1193 = vmatpush1.msra.mxu0 0.0
  %1194 = vmatprep.subr.mxu0 0.0
  %1195 = vmatpush1.msra.mxu0 0.0
  %1196 = vmatprep.subr.mxu0 0.0
  %1197 = vmatpush1.msra.mxu0 0.0
  %1198 = vmatprep.subr.mxu0 0.0
  %1199 = vmatpush1.msra.mxu0 0.0
  %1200 = vmatprep.subr.mxu0 0.0
  %1201 = vmatpush1.msra.mxu0 %v353
  %1202 = vmatprep.subr.mxu0 0.0
  %1203 = vmatpush1.msra.mxu0 %v352
  %1204 = vmatprep.subr.mxu0 0.0
  %1205 = vmatpush1.msra.mxu0 %v351
  %1206 = vmatprep.subr.mxu0 0.0
  %1207 = vmatpush1.msra.mxu0 %v350
  %1208 = vmatprep.subr.mxu0 0.0
  %1209 = vmatpush2.msra.mxu0 0.0
  %1210 = vmatprep.subr.mxu0 0.0
  %1211 = vmatpush2.msra.mxu0 0.0
  %1212 = vmatprep.subr.mxu0 0.0
  %1213 = vmatpush2.msra.mxu0 0.0
  %1214 = vmatprep.subr.mxu0 0.0
  %1215 = vmatpush2.msra.mxu0 0.0
  %1216 = vmatprep.subr.mxu0 0.0
  %1217 = vmatpush2.msra.mxu0 0.0
  %1218 = vmatprep.subr.mxu0 0.0
  %1219 = vmatpush2.msra.mxu0 0.0
  %1220 = vmatprep.subr.mxu0 0.0
  %1221 = vmatpush2.msra.mxu0 0.0
  %1222 = vmatprep.subr.mxu0 0.0
  %1223 = vmatpush2.msra.mxu0 0.0
  %1224 = vmatprep.subr.mxu0 0.0
  %1225 = vmatpush2.msra.mxu0 0.0
  %1226 = vmatprep.subr.mxu0 0.0
  %1227 = vmatpush2.msra.mxu0 0.0
  %1228 = vmatprep.subr.mxu0 0.0
  %1229 = vmatpush2.msra.mxu0 0.0
  %1230 = vmatprep.subr.mxu0 0.0
  %1231 = vmatpush2.msra.mxu0 0.0
  %1232 = vmatprep.subr.mxu0 0.0
  %1233 = vmatpush2.msra.mxu0 0.0
  %1234 = vmatprep.subr.mxu0 0.0
  %1235 = vmatpush2.msra.mxu0 0.0
  %1236 = vmatprep.subr.mxu0 0.0
  %1237 = vmatpush2.msra.mxu0 0.0
  %1238 = vmatprep.subr.mxu0 0.0
  %1239 = vmatpush2.msra.mxu0 0.0
  %1240 = vmatprep.mubr.f32.mxu0 0.0
  %1241 = vmatmul.mubr.f32.gmra.mxu0 %v1104
  %v1242 = vpop.f32.mrf.mxu0
  %v1243 = vadd.f32 0.0, %v1242
  %v1244 = vpop.f32.mrf.mxu0
  %1245 = vdwg.mxu0
  %v1246 = vadd.f32 %v156, %v1173
  %v1247 = vxor.u32 %v1246, 2147483648
  %v1248 = vmul.f32 %v1247, 1.442695
  %v1249 = vpow.pop %v1248
  %v1250 = vadd.f32 %v1249, 1.0
  %v1251 = vrcp.pop %v1250
  %v1252 = vmul.f32 1.0, %v1251
  %v1253 = vadd.f32 %v250, %v1243
  %v1254 = vxor.u32 %v1253, 2147483648
  %v1255 = vmul.f32 %v1254, 1.442695
  %v1256 = vpow.pop %v1255
  %v1257 = vadd.f32 %v1256, 1.0
  %v1258 = vrcp.pop %v1257
  %v1259 = vmul.f32 1.0, %v1258
  %1260 = vmatprep.subr.mxu0 0.0
  %1261 = vmatpush1.msra.mxu0 0.0
  %1262 = vmatprep.subr.mxu0 0.0
  %1263 = vmatpush1.msra.mxu0 0.0
  %1264 = vmatprep.subr.mxu0 0.0
  %1265 = vmatpush1.msra.mxu0 0.0
  %1266 = vmatprep.subr.mxu0 0.0
  %1267 = vmatpush1.msra.mxu0 0.0
  %1268 = vmatprep.subr.mxu0 0.0
  %1269 = vmatpush1.msra.mxu0 0.0
  %1270 = vmatprep.subr.mxu0 0.0
  %1271 = vmatpush1.msra.mxu0 0.0
  %1272 = vmatprep.subr.mxu0 0.0
  %1273 = vmatpush1.msra.mxu0 0.0
  %1274 = vmatprep.subr.mxu0 0.0
  %1275 = vmatpush1.msra.mxu0 0.0
  %1276 = vmatprep.subr.mxu0 0.0
  %1277 = vmatpush1.msra.mxu0 0.0
  %1278 = vmatprep.subr.mxu0 0.0
  %1279 = vmatpush1.msra.mxu0 0.0
  %1280 = vmatprep.subr.mxu0 0.0
  %1281 = vmatpush1.msra.mxu0 0.0
  %1282 = vmatprep.subr.mxu0 0.0
  %1283 = vmatpush1.msra.mxu0 0.0
  %1284 = vmatprep.subr.mxu0 0.0
  %1285 = vmatpush1.msra.mxu0 %v358
  %1286 = vmatprep.subr.mxu0 0.0
  %1287 = vmatpush1.msra.mxu0 %v357
  %1288 = vmatprep.subr.mxu0 0.0
  %1289 = vmatpush1.msra.mxu0 %v356
  %1290 = vmatprep.subr.mxu0 0.0
  %1291 = vmatpush1.msra.mxu0 %v355
  %1292 = vmatprep.subr.mxu0 0.0
  %1293 = vmatpush2.msra.mxu0 0.0
  %1294 = vmatprep.subr.mxu0 0.0
  %1295 = vmatpush2.msra.mxu0 0.0
  %1296 = vmatprep.subr.mxu0 0.0
  %1297 = vmatpush2.msra.mxu0 0.0
  %1298 = vmatprep.subr.mxu0 0.0
  %1299 = vmatpush2.msra.mxu0 0.0
  %1300 = vmatprep.subr.mxu0 0.0
  %1301 = vmatpush2.msra.mxu0 0.0
  %1302 = vmatprep.subr.mxu0 0.0
  %1303 = vmatpush2.msra.mxu0 0.0
  %1304 = vmatprep.subr.mxu0 0.0
  %1305 = vmatpush2.msra.mxu0 0.0
  %1306 = vmatprep.subr.mxu0 0.0
  %1307 = vmatpush2.msra.mxu0 0.0
  %1308 = vmatprep.subr.mxu0 0.0
  %1309 = vmatpush2.msra.mxu0 0.0
  %1310 = vmatprep.subr.mxu0 0.0
  %1311 = vmatpush2.msra.mxu0 0.0
  %1312 = vmatprep.subr.mxu0 0.0
  %1313 = vmatpush2.msra.mxu0 0.0
  %1314 = vmatprep.subr.mxu0 0.0
  %1315 = vmatpush2.msra.mxu0 0.0
  %1316 = vmatprep.subr.mxu0 0.0
  %1317 = vmatpush2.msra.mxu0 0.0
  %1318 = vmatprep.subr.mxu0 0.0
  %1319 = vmatpush2.msra.mxu0 0.0
  %1320 = vmatprep.subr.mxu0 0.0
  %1321 = vmatpush2.msra.mxu0 0.0
  %1322 = vmatprep.subr.mxu0 0.0
  %1323 = vmatpush2.msra.mxu0 0.0
  %1324 = vmatprep.mubr.f32.mxu0 0.0
  %1325 = vmatmul.mubr.f32.gmra.mxu0 %v1104
  %v1326 = vpop.f32.mrf.mxu0
  %v1327 = vadd.f32 %v364, %v1326
  %v1328 = vpop.f32.mrf.mxu0
  %1329 = vdwg.mxu0
  %v1330 = vmul.f32 %v1252, %v1327
  %v1331 = vadd.f32 %v344, %v1330
  %v1332 = vtanh.pop %v1331
  %v1333 = vsub.f32 1.0, %v1259
  %v1334 = vmul.f32 %v1333, %v1332
  %v1336 = vmul.f32 %v1259, %v1103
  %v1337 = vadd.f32 %v1334, %v1336
  %v1339 = vsel %vm366, %v1337, 0
  %1341 = vmatprep.subr.mxu0 0.0
  %1342 = vmatpush1.msra.mxu0 0.0
  %1343 = vmatprep.subr.mxu0 0.0
  %1344 = vmatpush1.msra.mxu0 0.0
  %1345 = vmatprep.subr.mxu0 0.0
  %1346 = vmatpush1.msra.mxu0 0.0
  %1347 = vmatprep.subr.mxu0 0.0
  %1348 = vmatpush1.msra.mxu0 0.0
  %1349 = vmatprep.subr.mxu0 0.0
  %1350 = vmatpush1.msra.mxu0 0.0
  %1351 = vmatprep.subr.mxu0 0.0
  %1352 = vmatpush1.msra.mxu0 0.0
  %1353 = vmatprep.subr.mxu0 0.0
  %1354 = vmatpush1.msra.mxu0 0.0
  %1355 = vmatprep.subr.mxu0 0.0
  %1356 = vmatpush1.msra.mxu0 0.0
  %1357 = vmatprep.subr.mxu0 0.0
  %1358 = vmatpush1.msra.mxu0 0.0
  %1359 = vmatprep.subr.mxu0 0.0
  %1360 = vmatpush1.msra.mxu0 0.0
  %1361 = vmatprep.subr.mxu0 0.0
  %1362 = vmatpush1.msra.mxu0 0.0
  %1363 = vmatprep.subr.mxu0 0.0
  %1364 = vmatpush1.msra.mxu0 0.0
  %1365 = vmatprep.subr.mxu0 0.0
  %1366 = vmatpush1.msra.mxu0 %v348
  %1367 = vmatprep.subr.mxu0 0.0
  %1368 = vmatpush1.msra.mxu0 %v347
  %1369 = vmatprep.subr.mxu0 0.0
  %1370 = vmatpush1.msra.mxu0 %v346
  %1371 = vmatprep.subr.mxu0 0.0
  %1372 = vmatpush1.msra.mxu0 %v345
  %1373 = vmatprep.subr.mxu0 0.0
  %1374 = vmatpush2.msra.mxu0 0.0
  %1375 = vmatprep.subr.mxu0 0.0
  %1376 = vmatpush2.msra.mxu0 0.0
  %1377 = vmatprep.subr.mxu0 0.0
  %1378 = vmatpush2.msra.mxu0 0.0
  %1379 = vmatprep.subr.mxu0 0.0
  %1380 = vmatpush2.msra.mxu0 0.0
  %1381 = vmatprep.subr.mxu0 0.0
  %1382 = vmatpush2.msra.mxu0 0.0
  %1383 = vmatprep.subr.mxu0 0.0
  %1384 = vmatpush2.msra.mxu0 0.0
  %1385 = vmatprep.subr.mxu0 0.0
  %1386 = vmatpush2.msra.mxu0 0.0
  %1387 = vmatprep.subr.mxu0 0.0
  %1388 = vmatpush2.msra.mxu0 0.0
  %1389 = vmatprep.subr.mxu0 0.0
  %1390 = vmatpush2.msra.mxu0 0.0
  %1391 = vmatprep.subr.mxu0 0.0
  %1392 = vmatpush2.msra.mxu0 0.0
  %1393 = vmatprep.subr.mxu0 0.0
  %1394 = vmatpush2.msra.mxu0 0.0
  %1395 = vmatprep.subr.mxu0 0.0
  %1396 = vmatpush2.msra.mxu0 0.0
  %1397 = vmatprep.subr.mxu0 0.0
  %1398 = vmatpush2.msra.mxu0 0.0
  %1399 = vmatprep.subr.mxu0 0.0
  %1400 = vmatpush2.msra.mxu0 0.0
  %1401 = vmatprep.subr.mxu0 0.0
  %1402 = vmatpush2.msra.mxu0 0.0
  %1403 = vmatprep.subr.mxu0 0.0
  %1404 = vmatpush2.msra.mxu0 0.0
  %1405 = vmatprep.mubr.f32.mxu0 0.0
  %1406 = vmatmul.mubr.f32.gmra.mxu0 %v1339
  %v1407 = vpop.f32.mrf.mxu0
  %v1408 = vadd.f32 0.0, %v1407
  %v1409 = vpop.f32.mrf.mxu0
  %1410 = vdwg.mxu0
  %1411 = vmatprep.subr.mxu0 0.0
  %1412 = vmatpush1.msra.mxu0 0.0
  %1413 = vmatprep.subr.mxu0 0.0
  %1414 = vmatpush1.msra.mxu0 0.0
  %1415 = vmatprep.subr.mxu0 0.0
  %1416 = vmatpush1.msra.mxu0 0.0
  %1417 = vmatprep.subr.mxu0 0.0
  %1418 = vmatpush1.msra.mxu0 0.0
  %1419 = vmatprep.subr.mxu0 0.0
  %1420 = vmatpush1.msra.mxu0 0.0
  %1421 = vmatprep.subr.mxu0 0.0
  %1422 = vmatpush1.msra.mxu0 0.0
  %1423 = vmatprep.subr.mxu0 0.0
  %1424 = vmatpush1.msra.mxu0 0.0
  %1425 = vmatprep.subr.mxu0 0.0
  %1426 = vmatpush1.msra.mxu0 0.0
  %1427 = vmatprep.subr.mxu0 0.0
  %1428 = vmatpush1.msra.mxu0 0.0
  %1429 = vmatprep.subr.mxu0 0.0
  %1430 = vmatpush1.msra.mxu0 0.0
  %1431 = vmatprep.subr.mxu0 0.0
  %1432 = vmatpush1.msra.mxu0 0.0
  %1433 = vmatprep.subr.mxu0 0.0
  %1434 = vmatpush1.msra.mxu0 0.0
  %1435 = vmatprep.subr.mxu0 0.0
  %1436 = vmatpush1.msra.mxu0 %v353
  %1437 = vmatprep.subr.mxu0 0.0
  %1438 = vmatpush1.msra.mxu0 %v352
  %1439 = vmatprep.subr.mxu0 0.0
  %1440 = vmatpush1.msra.mxu0 %v351
  %1441 = vmatprep.subr.mxu0 0.0
  %1442 = vmatpush1.msra.mxu0 %v350
  %1443 = vmatprep.subr.mxu0 0.0
  %1444 = vmatpush2.msra.mxu0 0.0
  %1445 = vmatprep.subr.mxu0 0.0
  %1446 = vmatpush2.msra.mxu0 0.0
  %1447 = vmatprep.subr.mxu0 0.0
  %1448 = vmatpush2.msra.mxu0 0.0
  %1449 = vmatprep.subr.mxu0 0.0
  %1450 = vmatpush2.msra.mxu0 0.0
  %1451 = vmatprep.subr.mxu0 0.0
  %1452 = vmatpush2.msra.mxu0 0.0
  %1453 = vmatprep.subr.mxu0 0.0
  %1454 = vmatpush2.msra.mxu0 0.0
  %1455 = vmatprep.subr.mxu0 0.0
  %1456 = vmatpush2.msra.mxu0 0.0
  %1457 = vmatprep.subr.mxu0 0.0
  %1458 = vmatpush2.msra.mxu0 0.0
  %1459 = vmatprep.subr.mxu0 0.0
  %1460 = vmatpush2.msra.mxu0 0.0
  %1461 = vmatprep.subr.mxu0 0.0
  %1462 = vmatpush2.msra.mxu0 0.0
  %1463 = vmatprep.subr.mxu0 0.0
  %1464 = vmatpush2.msra.mxu0 0.0
  %1465 = vmatprep.subr.mxu0 0.0
  %1466 = vmatpush2.msra.mxu0 0.0
  %1467 = vmatprep.subr.mxu0 0.0
  %1468 = vmatpush2.msra.mxu0 0.0
  %1469 = vmatprep.subr.mxu0 0.0
  %1470 = vmatpush2.msra.mxu0 0.0
  %1471 = vmatprep.subr.mxu0 0.0
  %1472 = vmatpush2.msra.mxu0 0.0
  %1473 = vmatprep.subr.mxu0 0.0
  %1474 = vmatpush2.msra.mxu0 0.0
  %1475 = vmatprep.mubr.f32.mxu0 0.0
  %1476 = vmatmul.mubr.f32.gmra.mxu0 %v1339
  %v1477 = vpop.f32.mrf.mxu0
  %v1478 = vadd.f32 0.0, %v1477
  %v1479 = vpop.f32.mrf.mxu0
  %1480 = vdwg.mxu0
  %v1482 = vrot.slane %v1408, 2
  %v1484 = vadd.f32 %v155, %v1482
  %v1485 = vxor.u32 %v1484, 2147483648
  %v1486 = vmul.f32 %v1485, 1.442695
  %v1487 = vpow.pop %v1486
  %v1488 = vadd.f32 %v1487, 1.0
  %v1489 = vrcp.pop %v1488
  %v1490 = vmul.f32 1.0, %v1489
  %v1492 = vrot.slane %v1478, 2
  %v1494 = vadd.f32 %v249, %v1492
  %v1495 = vxor.u32 %v1494, 2147483648
  %v1496 = vmul.f32 %v1495, 1.442695
  %v1497 = vpow.pop %v1496
  %v1498 = vadd.f32 %v1497, 1.0
  %v1499 = vrcp.pop %v1498
  %v1500 = vmul.f32 1.0, %v1499
  %1501 = vmatprep.subr.mxu0 0.0
  %1502 = vmatpush1.msra.mxu0 0.0
  %1503 = vmatprep.subr.mxu0 0.0
  %1504 = vmatpush1.msra.mxu0 0.0
  %1505 = vmatprep.subr.mxu0 0.0
  %1506 = vmatpush1.msra.mxu0 0.0
  %1507 = vmatprep.subr.mxu0 0.0
  %1508 = vmatpush1.msra.mxu0 0.0
  %1509 = vmatprep.subr.mxu0 0.0
  %1510 = vmatpush1.msra.mxu0 0.0
  %1511 = vmatprep.subr.mxu0 0.0
  %1512 = vmatpush1.msra.mxu0 0.0
  %1513 = vmatprep.subr.mxu0 0.0
  %1514 = vmatpush1.msra.mxu0 0.0
  %1515 = vmatprep.subr.mxu0 0.0
  %1516 = vmatpush1.msra.mxu0 0.0
  %1517 = vmatprep.subr.mxu0 0.0
  %1518 = vmatpush1.msra.mxu0 0.0
  %1519 = vmatprep.subr.mxu0 0.0
  %1520 = vmatpush1.msra.mxu0 0.0
  %1521 = vmatprep.subr.mxu0 0.0
  %1522 = vmatpush1.msra.mxu0 0.0
  %1523 = vmatprep.subr.mxu0 0.0
  %1524 = vmatpush1.msra.mxu0 0.0
  %1525 = vmatprep.subr.mxu0 0.0
  %1526 = vmatpush1.msra.mxu0 %v358
  %1527 = vmatprep.subr.mxu0 0.0
  %1528 = vmatpush1.msra.mxu0 %v357
  %1529 = vmatprep.subr.mxu0 0.0
  %1530 = vmatpush1.msra.mxu0 %v356
  %1531 = vmatprep.subr.mxu0 0.0
  %1532 = vmatpush1.msra.mxu0 %v355
  %1533 = vmatprep.subr.mxu0 0.0
  %1534 = vmatpush2.msra.mxu0 0.0
  %1535 = vmatprep.subr.mxu0 0.0
  %1536 = vmatpush2.msra.mxu0 0.0
  %1537 = vmatprep.subr.mxu0 0.0
  %1538 = vmatpush2.msra.mxu0 0.0
  %1539 = vmatprep.subr.mxu0 0.0
  %1540 = vmatpush2.msra.mxu0 0.0
  %1541 = vmatprep.subr.mxu0 0.0
  %1542 = vmatpush2.msra.mxu0 0.0
  %1543 = vmatprep.subr.mxu0 0.0
  %1544 = vmatpush2.msra.mxu0 0.0
  %1545 = vmatprep.subr.mxu0 0.0
  %1546 = vmatpush2.msra.mxu0 0.0
  %1547 = vmatprep.subr.mxu0 0.0
  %1548 = vmatpush2.msra.mxu0 0.0
  %1549 = vmatprep.subr.mxu0 0.0
  %1550 = vmatpush2.msra.mxu0 0.0
  %1551 = vmatprep.subr.mxu0 0.0
  %1552 = vmatpush2.msra.mxu0 0.0
  %1553 = vmatprep.subr.mxu0 0.0
  %1554 = vmatpush2.msra.mxu0 0.0
  %1555 = vmatprep.subr.mxu0 0.0
  %1556 = vmatpush2.msra.mxu0 0.0
  %1557 = vmatprep.subr.mxu0 0.0
  %1558 = vmatpush2.msra.mxu0 0.0
  %1559 = vmatprep.subr.mxu0 0.0
  %1560 = vmatpush2.msra.mxu0 0.0
  %1561 = vmatprep.subr.mxu0 0.0
  %1562 = vmatpush2.msra.mxu0 0.0
  %1563 = vmatprep.subr.mxu0 0.0
  %1564 = vmatpush2.msra.mxu0 0.0
  %1565 = vmatprep.mubr.f32.mxu0 0.0
  %1566 = vmatmul.mubr.f32.gmra.mxu0 %v1339
  %v1567 = vpop.f32.mrf.mxu0
  %v1568 = vadd.f32 %v364, %v1567
  %v1569 = vpop.f32.mrf.mxu0
  %1570 = vdwg.mxu0
  %v1572 = vrot.slane %v1568, 2
  %v1574 = vmul.f32 %v1490, %v1572
  %v1575 = vadd.f32 %v343, %v1574
  %v1576 = vtanh.pop %v1575
  %v1577 = vsub.f32 1.0, %v1500
  %v1578 = vmul.f32 %v1577, %v1576
  %v1579 = vrot.slane %v1337, 2
  %v1581 = vmul.f32 %v1500, %v1579
  %v1582 = vadd.f32 %v1578, %v1581
  %v1584 = vrot.slane %v1582, 6
  %v1585 = vsel %vm366, %v1584, 0
  %1587 = vmatprep.subr.mxu0 0.0
  %1588 = vmatpush1.msra.mxu0 0.0
  %1589 = vmatprep.subr.mxu0 0.0
  %1590 = vmatpush1.msra.mxu0 0.0
  %1591 = vmatprep.subr.mxu0 0.0
  %1592 = vmatpush1.msra.mxu0 0.0
  %1593 = vmatprep.subr.mxu0 0.0
  %1594 = vmatpush1.msra.mxu0 0.0
  %1595 = vmatprep.subr.mxu0 0.0
  %1596 = vmatpush1.msra.mxu0 0.0
  %1597 = vmatprep.subr.mxu0 0.0
  %1598 = vmatpush1.msra.mxu0 0.0
  %1599 = vmatprep.subr.mxu0 0.0
  %1600 = vmatpush1.msra.mxu0 0.0
  %1601 = vmatprep.subr.mxu0 0.0
  %1602 = vmatpush1.msra.mxu0 0.0
  %1603 = vmatprep.subr.mxu0 0.0
  %1604 = vmatpush1.msra.mxu0 0.0
  %1605 = vmatprep.subr.mxu0 0.0
  %1606 = vmatpush1.msra.mxu0 0.0
  %1607 = vmatprep.subr.mxu0 0.0
  %1608 = vmatpush1.msra.mxu0 0.0
  %1609 = vmatprep.subr.mxu0 0.0
  %1610 = vmatpush1.msra.mxu0 0.0
  %1611 = vmatprep.subr.mxu0 0.0
  %1612 = vmatpush1.msra.mxu0 %v348
  %1613 = vmatprep.subr.mxu0 0.0
  %1614 = vmatpush1.msra.mxu0 %v347
  %1615 = vmatprep.subr.mxu0 0.0
  %1616 = vmatpush1.msra.mxu0 %v346
  %1617 = vmatprep.subr.mxu0 0.0
  %1618 = vmatpush1.msra.mxu0 %v345
  %1619 = vmatprep.subr.mxu0 0.0
  %1620 = vmatpush2.msra.mxu0 0.0
  %1621 = vmatprep.subr.mxu0 0.0
  %1622 = vmatpush2.msra.mxu0 0.0
  %1623 = vmatprep.subr.mxu0 0.0
  %1624 = vmatpush2.msra.mxu0 0.0
  %1625 = vmatprep.subr.mxu0 0.0
  %1626 = vmatpush2.msra.mxu0 0.0
  %1627 = vmatprep.subr.mxu0 0.0
  %1628 = vmatpush2.msra.mxu0 0.0
  %1629 = vmatprep.subr.mxu0 0.0
  %1630 = vmatpush2.msra.mxu0 0.0
  %1631 = vmatprep.subr.mxu0 0.0
  %1632 = vmatpush2.msra.mxu0 0.0
  %1633 = vmatprep.subr.mxu0 0.0
  %1634 = vmatpush2.msra.mxu0 0.0
  %1635 = vmatprep.subr.mxu0 0.0
  %1636 = vmatpush2.msra.mxu0 0.0
  %1637 = vmatprep.subr.mxu0 0.0
  %1638 = vmatpush2.msra.mxu0 0.0
  %1639 = vmatprep.subr.mxu0 0.0
  %1640 = vmatpush2.msra.mxu0 0.0
  %1641 = vmatprep.subr.mxu0 0.0
  %1642 = vmatpush2.msra.mxu0 0.0
  %1643 = vmatprep.subr.mxu0 0.0
  %1644 = vmatpush2.msra.mxu0 0.0
  %1645 = vmatprep.subr.mxu0 0.0
  %1646 = vmatpush2.msra.mxu0 0.0
  %1647 = vmatprep.subr.mxu0 0.0
  %1648 = vmatpush2.msra.mxu0 0.0
  %1649 = vmatprep.subr.mxu0 0.0
  %1650 = vmatpush2.msra.mxu0 0.0
  %1651 = vmatprep.mubr.f32.mxu0 0.0
  %1652 = vmatmul.mubr.f32.gmra.mxu0 %v1585
  %v1653 = vpop.f32.mrf.mxu0
  %v1654 = vadd.f32 0.0, %v1653
  %v1655 = vpop.f32.mrf.mxu0
  %1656 = vdwg.mxu0
  %1657 = vmatprep.subr.mxu0 0.0
  %1658 = vmatpush1.msra.mxu0 0.0
  %1659 = vmatprep.subr.mxu0 0.0
  %1660 = vmatpush1.msra.mxu0 0.0
  %1661 = vmatprep.subr.mxu0 0.0
  %1662 = vmatpush1.msra.mxu0 0.0
  %1663 = vmatprep.subr.mxu0 0.0
  %1664 = vmatpush1.msra.mxu0 0.0
  %1665 = vmatprep.subr.mxu0 0.0
  %1666 = vmatpush1.msra.mxu0 0.0
  %1667 = vmatprep.subr.mxu0 0.0
  %1668 = vmatpush1.msra.mxu0 0.0
  %1669 = vmatprep.subr.mxu0 0.0
  %1670 = vmatpush1.msra.mxu0 0.0
  %1671 = vmatprep.subr.mxu0 0.0
  %1672 = vmatpush1.msra.mxu0 0.0
  %1673 = vmatprep.subr.mxu0 0.0
  %1674 = vmatpush1.msra.mxu0 0.0
  %1675 = vmatprep.subr.mxu0 0.0
  %1676 = vmatpush1.msra.mxu0 0.0
  %1677 = vmatprep.subr.mxu0 0.0
  %1678 = vmatpush1.msra.mxu0 0.0
  %1679 = vmatprep.subr.mxu0 0.0
  %1680 = vmatpush1.msra.mxu0 0.0
  %1681 = vmatprep.subr.mxu0 0.0
  %1682 = vmatpush1.msra.mxu0 %v353
  %1683 = vmatprep.subr.mxu0 0.0
  %1684 = vmatpush1.msra.mxu0 %v352
  %1685 = vmatprep.subr.mxu0 0.0
  %1686 = vmatpush1.msra.mxu0 %v351
  %1687 = vmatprep.subr.mxu0 0.0
  %1688 = vmatpush1.msra.mxu0 %v350
  %1689 = vmatprep.subr.mxu0 0.0
  %1690 = vmatpush2.msra.mxu0 0.0
  %1691 = vmatprep.subr.mxu0 0.0
  %1692 = vmatpush2.msra.mxu0 0.0
  %1693 = vmatprep.subr.mxu0 0.0
  %1694 = vmatpush2.msra.mxu0 0.0
  %1695 = vmatprep.subr.mxu0 0.0
  %1696 = vmatpush2.msra.mxu0 0.0
  %1697 = vmatprep.subr.mxu0 0.0
  %1698 = vmatpush2.msra.mxu0 0.0
  %1699 = vmatprep.subr.mxu0 0.0
  %1700 = vmatpush2.msra.mxu0 0.0
  %1701 = vmatprep.subr.mxu0 0.0
  %1702 = vmatpush2.msra.mxu0 0.0
  %1703 = vmatprep.subr.mxu0 0.0
  %1704 = vmatpush2.msra.mxu0 0.0
  %1705 = vmatprep.subr.mxu0 0.0
  %1706 = vmatpush2.msra.mxu0 0.0
  %1707 = vmatprep.subr.mxu0 0.0
  %1708 = vmatpush2.msra.mxu0 0.0
  %1709 = vmatprep.subr.mxu0 0.0
  %1710 = vmatpush2.msra.mxu0 0.0
  %1711 = vmatprep.subr.mxu0 0.0
  %1712 = vmatpush2.msra.mxu0 0.0
  %1713 = vmatprep.subr.mxu0 0.0
  %1714 = vmatpush2.msra.mxu0 0.0
  %1715 = vmatprep.subr.mxu0 0.0
  %1716 = vmatpush2.msra.mxu0 0.0
  %1717 = vmatprep.subr.mxu0 0.0
  %1718 = vmatpush2.msra.mxu0 0.0
  %1719 = vmatprep.subr.mxu0 0.0
  %1720 = vmatpush2.msra.mxu0 0.0
  %1721 = vmatprep.mubr.f32.mxu0 0.0
  %1722 = vmatmul.mubr.f32.gmra.mxu0 %v1585
  %v1723 = vpop.f32.mrf.mxu0
  %v1724 = vadd.f32 0.0, %v1723
  %v1725 = vpop.f32.mrf.mxu0
  %1726 = vdwg.mxu0
  %v1728 = vrot.slane %v1654, 4
  %v1730 = vadd.f32 %v155, %v1728
  %v1731 = vxor.u32 %v1730, 2147483648
  %v1732 = vmul.f32 %v1731, 1.442695
  %v1733 = vpow.pop %v1732
  %v1734 = vadd.f32 %v1733, 1.0
  %v1735 = vrcp.pop %v1734
  %v1736 = vmul.f32 1.0, %v1735
  %v1738 = vrot.slane %v1724, 4
  %v1740 = vadd.f32 %v249, %v1738
  %v1741 = vxor.u32 %v1740, 2147483648
  %v1742 = vmul.f32 %v1741, 1.442695
  %v1743 = vpow.pop %v1742
  %v1744 = vadd.f32 %v1743, 1.0
  %v1745 = vrcp.pop %v1744
  %v1746 = vmul.f32 1.0, %v1745
  %1747 = vmatprep.subr.mxu0 0.0
  %1748 = vmatpush1.msra.mxu0 0.0
  %1749 = vmatprep.subr.mxu0 0.0
  %1750 = vmatpush1.msra.mxu0 0.0
  %1751 = vmatprep.subr.mxu0 0.0
  %1752 = vmatpush1.msra.mxu0 0.0
  %1753 = vmatprep.subr.mxu0 0.0
  %1754 = vmatpush1.msra.mxu0 0.0
  %1755 = vmatprep.subr.mxu0 0.0
  %1756 = vmatpush1.msra.mxu0 0.0
  %1757 = vmatprep.subr.mxu0 0.0
  %1758 = vmatpush1.msra.mxu0 0.0
  %1759 = vmatprep.subr.mxu0 0.0
  %1760 = vmatpush1.msra.mxu0 0.0
  %1761 = vmatprep.subr.mxu0 0.0
  %1762 = vmatpush1.msra.mxu0 0.0
  %1763 = vmatprep.subr.mxu0 0.0
  %1764 = vmatpush1.msra.mxu0 0.0
  %1765 = vmatprep.subr.mxu0 0.0
  %1766 = vmatpush1.msra.mxu0 0.0
  %1767 = vmatprep.subr.mxu0 0.0
  %1768 = vmatpush1.msra.mxu0 0.0
  %1769 = vmatprep.subr.mxu0 0.0
  %1770 = vmatpush1.msra.mxu0 0.0
  %1771 = vmatprep.subr.mxu0 0.0
  %1772 = vmatpush1.msra.mxu0 %v358
  %1773 = vmatprep.subr.mxu0 0.0
  %1774 = vmatpush1.msra.mxu0 %v357
  %1775 = vmatprep.subr.mxu0 0.0
  %1776 = vmatpush1.msra.mxu0 %v356
  %1777 = vmatprep.subr.mxu0 0.0
  %1778 = vmatpush1.msra.mxu0 %v355
  %1779 = vmatprep.subr.mxu0 0.0
  %1780 = vmatpush2.msra.mxu0 0.0
  %1781 = vmatprep.subr.mxu0 0.0
  %1782 = vmatpush2.msra.mxu0 0.0
  %1783 = vmatprep.subr.mxu0 0.0
  %1784 = vmatpush2.msra.mxu0 0.0
  %1785 = vmatprep.subr.mxu0 0.0
  %1786 = vmatpush2.msra.mxu0 0.0
  %1787 = vmatprep.subr.mxu0 0.0
  %1788 = vmatpush2.msra.mxu0 0.0
  %1789 = vmatprep.subr.mxu0 0.0
  %1790 = vmatpush2.msra.mxu0 0.0
  %1791 = vmatprep.subr.mxu0 0.0
  %1792 = vmatpush2.msra.mxu0 0.0
  %1793 = vmatprep.subr.mxu0 0.0
  %1794 = vmatpush2.msra.mxu0 0.0
  %1795 = vmatprep.subr.mxu0 0.0
  %1796 = vmatpush2.msra.mxu0 0.0
  %1797 = vmatprep.subr.mxu0 0.0
  %1798 = vmatpush2.msra.mxu0 0.0
  %1799 = vmatprep.subr.mxu0 0.0
  %1800 = vmatpush2.msra.mxu0 0.0
  %1801 = vmatprep.subr.mxu0 0.0
  %1802 = vmatpush2.msra.mxu0 0.0
  %1803 = vmatprep.subr.mxu0 0.0
  %1804 = vmatpush2.msra.mxu0 0.0
  %1805 = vmatprep.subr.mxu0 0.0
  %1806 = vmatpush2.msra.mxu0 0.0
  %1807 = vmatprep.subr.mxu0 0.0
  %1808 = vmatpush2.msra.mxu0 0.0
  %1809 = vmatprep.subr.mxu0 0.0
  %1810 = vmatpush2.msra.mxu0 0.0
  %1811 = vmatprep.mubr.f32.mxu0 0.0
  %1812 = vmatmul.mubr.f32.gmra.mxu0 %v1585
  %v1813 = vpop.f32.mrf.mxu0
  %v1814 = vadd.f32 %v364, %v1813
  %v1815 = vpop.f32.mrf.mxu0
  %1816 = vdwg.mxu0
  %v1818 = vrot.slane %v1814, 4
  %v1820 = vmul.f32 %v1736, %v1818
  %v1821 = vadd.f32 %v343, %v1820
  %v1822 = vtanh.pop %v1821
  %v1823 = vsub.f32 1.0, %v1746
  %v1824 = vmul.f32 %v1823, %v1822
  %v1825 = vrot.slane %v1582, 2
  %v1827 = vmul.f32 %v1746, %v1825
  %v1828 = vadd.f32 %v1824, %v1827
  %v1830 = vrot.slane %v1828, 4
  %v1831 = vsel %vm366, %v1830, 0
  %1833 = vmatprep.subr.mxu0 0.0
  %1834 = vmatpush1.msra.mxu0 0.0
  %1835 = vmatprep.subr.mxu0 0.0
  %1836 = vmatpush1.msra.mxu0 0.0
  %1837 = vmatprep.subr.mxu0 0.0
  %1838 = vmatpush1.msra.mxu0 0.0
  %1839 = vmatprep.subr.mxu0 0.0
  %1840 = vmatpush1.msra.mxu0 0.0
  %1841 = vmatprep.subr.mxu0 0.0
  %1842 = vmatpush1.msra.mxu0 0.0
  %1843 = vmatprep.subr.mxu0 0.0
  %1844 = vmatpush1.msra.mxu0 0.0
  %1845 = vmatprep.subr.mxu0 0.0
  %1846 = vmatpush1.msra.mxu0 0.0
  %1847 = vmatprep.subr.mxu0 0.0
  %1848 = vmatpush1.msra.mxu0 0.0
  %1849 = vmatprep.subr.mxu0 0.0
  %1850 = vmatpush1.msra.mxu0 0.0
  %1851 = vmatprep.subr.mxu0 0.0
  %1852 = vmatpush1.msra.mxu0 0.0
  %1853 = vmatprep.subr.mxu0 0.0
  %1854 = vmatpush1.msra.mxu0 0.0
  %1855 = vmatprep.subr.mxu0 0.0
  %1856 = vmatpush1.msra.mxu0 0.0
  %1857 = vmatprep.subr.mxu0 0.0
  %1858 = vmatpush1.msra.mxu0 %v348
  %1859 = vmatprep.subr.mxu0 0.0
  %1860 = vmatpush1.msra.mxu0 %v347
  %1861 = vmatprep.subr.mxu0 0.0
  %1862 = vmatpush1.msra.mxu0 %v346
  %1863 = vmatprep.subr.mxu0 0.0
  %1864 = vmatpush1.msra.mxu0 %v345
  %1865 = vmatprep.subr.mxu0 0.0
  %1866 = vmatpush2.msra.mxu0 0.0
  %1867 = vmatprep.subr.mxu0 0.0
  %1868 = vmatpush2.msra.mxu0 0.0
  %1869 = vmatprep.subr.mxu0 0.0
  %1870 = vmatpush2.msra.mxu0 0.0
  %1871 = vmatprep.subr.mxu0 0.0
  %1872 = vmatpush2.msra.mxu0 0.0
  %1873 = vmatprep.subr.mxu0 0.0
  %1874 = vmatpush2.msra.mxu0 0.0
  %1875 = vmatprep.subr.mxu0 0.0
  %1876 = vmatpush2.msra.mxu0 0.0
  %1877 = vmatprep.subr.mxu0 0.0
  %1878 = vmatpush2.msra.mxu0 0.0
  %1879 = vmatprep.subr.mxu0 0.0
  %1880 = vmatpush2.msra.mxu0 0.0
  %1881 = vmatprep.subr.mxu0 0.0
  %1882 = vmatpush2.msra.mxu0 0.0
  %1883 = vmatprep.subr.mxu0 0.0
  %1884 = vmatpush2.msra.mxu0 0.0
  %1885 = vmatprep.subr.mxu0 0.0
  %1886 = vmatpush2.msra.mxu0 0.0
  %1887 = vmatprep.subr.mxu0 0.0
  %1888 = vmatpush2.msra.mxu0 0.0
  %1889 = vmatprep.subr.mxu0 0.0
  %1890 = vmatpush2.msra.mxu0 0.0
  %1891 = vmatprep.subr.mxu0 0.0
  %1892 = vmatpush2.msra.mxu0 0.0
  %1893 = vmatprep.subr.mxu0 0.0
  %1894 = vmatpush2.msra.mxu0 0.0
  %1895 = vmatprep.subr.mxu0 0.0
  %1896 = vmatpush2.msra.mxu0 0.0
  %1897 = vmatprep.mubr.f32.mxu0 0.0
  %1898 = vmatmul.mubr.f32.gmra.mxu0 %v1831
  %v1899 = vpop.f32.mrf.mxu0
  %v1900 = vadd.f32 0.0, %v1899
  %v1901 = vpop.f32.mrf.mxu0
  %1902 = vdwg.mxu0
  %1903 = vmatprep.subr.mxu0 0.0
  %1904 = vmatpush1.msra.mxu0 0.0
  %1905 = vmatprep.subr.mxu0 0.0
  %1906 = vmatpush1.msra.mxu0 0.0
  %1907 = vmatprep.subr.mxu0 0.0
  %1908 = vmatpush1.msra.mxu0 0.0
  %1909 = vmatprep.subr.mxu0 0.0
  %1910 = vmatpush1.msra.mxu0 0.0
  %1911 = vmatprep.subr.mxu0 0.0
  %1912 = vmatpush1.msra.mxu0 0.0
  %1913 = vmatprep.subr.mxu0 0.0
  %1914 = vmatpush1.msra.mxu0 0.0
  %1915 = vmatprep.subr.mxu0 0.0
  %1916 = vmatpush1.msra.mxu0 0.0
  %1917 = vmatprep.subr.mxu0 0.0
  %1918 = vmatpush1.msra.mxu0 0.0
  %1919 = vmatprep.subr.mxu0 0.0
  %1920 = vmatpush1.msra.mxu0 0.0
  %1921 = vmatprep.subr.mxu0 0.0
  %1922 = vmatpush1.msra.mxu0 0.0
  %1923 = vmatprep.subr.mxu0 0.0
  %1924 = vmatpush1.msra.mxu0 0.0
  %1925 = vmatprep.subr.mxu0 0.0
  %1926 = vmatpush1.msra.mxu0 0.0
  %1927 = vmatprep.subr.mxu0 0.0
  %1928 = vmatpush1.msra.mxu0 %v353
  %1929 = vmatprep.subr.mxu0 0.0
  %1930 = vmatpush1.msra.mxu0 %v352
  %1931 = vmatprep.subr.mxu0 0.0
  %1932 = vmatpush1.msra.mxu0 %v351
  %1933 = vmatprep.subr.mxu0 0.0
  %1934 = vmatpush1.msra.mxu0 %v350
  %1935 = vmatprep.subr.mxu0 0.0
  %1936 = vmatpush2.msra.mxu0 0.0
  %1937 = vmatprep.subr.mxu0 0.0
  %1938 = vmatpush2.msra.mxu0 0.0
  %1939 = vmatprep.subr.mxu0 0.0
  %1940 = vmatpush2.msra.mxu0 0.0
  %1941 = vmatprep.subr.mxu0 0.0
  %1942 = vmatpush2.msra.mxu0 0.0
  %1943 = vmatprep.subr.mxu0 0.0
  %1944 = vmatpush2.msra.mxu0 0.0
  %1945 = vmatprep.subr.mxu0 0.0
  %1946 = vmatpush2.msra.mxu0 0.0
  %1947 = vmatprep.subr.mxu0 0.0
  %1948 = vmatpush2.msra.mxu0 0.0
  %1949 = vmatprep.subr.mxu0 0.0
  %1950 = vmatpush2.msra.mxu0 0.0
  %1951 = vmatprep.subr.mxu0 0.0
  %1952 = vmatpush2.msra.mxu0 0.0
  %1953 = vmatprep.subr.mxu0 0.0
  %1954 = vmatpush2.msra.mxu0 0.0
  %1955 = vmatprep.subr.mxu0 0.0
  %1956 = vmatpush2.msra.mxu0 0.0
  %1957 = vmatprep.subr.mxu0 0.0
  %1958 = vmatpush2.msra.mxu0 0.0
  %1959 = vmatprep.subr.mxu0 0.0
  %1960 = vmatpush2.msra.mxu0 0.0
  %1961 = vmatprep.subr.mxu0 0.0
  %1962 = vmatpush2.msra.mxu0 0.0
  %1963 = vmatprep.subr.mxu0 0.0
  %1964 = vmatpush2.msra.mxu0 0.0
  %1965 = vmatprep.subr.mxu0 0.0
  %1966 = vmatpush2.msra.mxu0 0.0
  %1967 = vmatprep.mubr.f32.mxu0 0.0
  %1968 = vmatmul.mubr.f32.gmra.mxu0 %v1831
  %v1969 = vpop.f32.mrf.mxu0
  %v1970 = vadd.f32 0.0, %v1969
  %v1971 = vpop.f32.mrf.mxu0
  %1972 = vdwg.mxu0
  %v1974 = vrot.slane %v1900, 6
  %v1976 = vadd.f32 %v155, %v1974
  %v1977 = vxor.u32 %v1976, 2147483648
  %v1978 = vmul.f32 %v1977, 1.442695
  %v1979 = vpow.pop %v1978
  %v1980 = vadd.f32 %v1979, 1.0
  %v1981 = vrcp.pop %v1980
  %v1982 = vmul.f32 1.0, %v1981
  %v1984 = vrot.slane %v1970, 6
  %v1986 = vadd.f32 %v249, %v1984
  %v1987 = vxor.u32 %v1986, 2147483648
  %v1988 = vmul.f32 %v1987, 1.442695
  %v1989 = vpow.pop %v1988
  %v1990 = vadd.f32 %v1989, 1.0
  %v1991 = vrcp.pop %v1990
  %v1992 = vmul.f32 1.0, %v1991
  %1993 = vmatprep.subr.mxu0 0.0
  %1994 = vmatpush1.msra.mxu0 0.0
  %1995 = vmatprep.subr.mxu0 0.0
  %1996 = vmatpush1.msra.mxu0 0.0
  %1997 = vmatprep.subr.mxu0 0.0
  %1998 = vmatpush1.msra.mxu0 0.0
  %1999 = vmatprep.subr.mxu0 0.0
  %2000 = vmatpush1.msra.mxu0 0.0
  %2001 = vmatprep.subr.mxu0 0.0
  %2002 = vmatpush1.msra.mxu0 0.0
  %2003 = vmatprep.subr.mxu0 0.0
  %2004 = vmatpush1.msra.mxu0 0.0
  %2005 = vmatprep.subr.mxu0 0.0
  %2006 = vmatpush1.msra.mxu0 0.0
  %2007 = vmatprep.subr.mxu0 0.0
  %2008 = vmatpush1.msra.mxu0 0.0
  %2009 = vmatprep.subr.mxu0 0.0
  %2010 = vmatpush1.msra.mxu0 0.0
  %2011 = vmatprep.subr.mxu0 0.0
  %2012 = vmatpush1.msra.mxu0 0.0
  %2013 = vmatprep.subr.mxu0 0.0
  %2014 = vmatpush1.msra.mxu0 0.0
  %2015 = vmatprep.subr.mxu0 0.0
  %2016 = vmatpush1.msra.mxu0 0.0
  %2017 = vmatprep.subr.mxu0 0.0
  %2018 = vmatpush1.msra.mxu0 %v358
  %2019 = vmatprep.subr.mxu0 0.0
  %2020 = vmatpush1.msra.mxu0 %v357
  %2021 = vmatprep.subr.mxu0 0.0
  %2022 = vmatpush1.msra.mxu0 %v356
  %2023 = vmatprep.subr.mxu0 0.0
  %2024 = vmatpush1.msra.mxu0 %v355
  %2025 = vmatprep.subr.mxu0 0.0
  %2026 = vmatpush2.msra.mxu0 0.0
  %2027 = vmatprep.subr.mxu0 0.0
  %2028 = vmatpush2.msra.mxu0 0.0
  %2029 = vmatprep.subr.mxu0 0.0
  %2030 = vmatpush2.msra.mxu0 0.0
  %2031 = vmatprep.subr.mxu0 0.0
  %2032 = vmatpush2.msra.mxu0 0.0
  %2033 = vmatprep.subr.mxu0 0.0
  %2034 = vmatpush2.msra.mxu0 0.0
  %2035 = vmatprep.subr.mxu0 0.0
  %2036 = vmatpush2.msra.mxu0 0.0
  %2037 = vmatprep.subr.mxu0 0.0
  %2038 = vmatpush2.msra.mxu0 0.0
  %2039 = vmatprep.subr.mxu0 0.0
  %2040 = vmatpush2.msra.mxu0 0.0
  %2041 = vmatprep.subr.mxu0 0.0
  %2042 = vmatpush2.msra.mxu0 0.0
  %2043 = vmatprep.subr.mxu0 0.0
  %2044 = vmatpush2.msra.mxu0 0.0
  %2045 = vmatprep.subr.mxu0 0.0
  %2046 = vmatpush2.msra.mxu0 0.0
  %2047 = vmatprep.subr.mxu0 0.0
  %2048 = vmatpush2.msra.mxu0 0.0
  %2049 = vmatprep.subr.mxu0 0.0
  %2050 = vmatpush2.msra.mxu0 0.0
  %2051 = vmatprep.subr.mxu0 0.0
  %2052 = vmatpush2.msra.mxu0 0.0
  %2053 = vmatprep.subr.mxu0 0.0
  %2054 = vmatpush2.msra.mxu0 0.0
  %2055 = vmatprep.subr.mxu0 0.0
  %2056 = vmatpush2.msra.mxu0 0.0
  %2057 = vmatprep.mubr.f32.mxu0 0.0
  %2058 = vmatmul.mubr.f32.gmra.mxu0 %v1831
  %v2059 = vpop.f32.mrf.mxu0
  %v2060 = vadd.f32 %v364, %v2059
  %v2061 = vpop.f32.mrf.mxu0
  %2062 = vdwg.mxu0
  %v2064 = vrot.slane %v2060, 6
  %v2066 = vmul.f32 %v1982, %v2064
  %v2067 = vadd.f32 %v343, %v2066
  %v2068 = vtanh.pop %v2067
  %v2069 = vsub.f32 1.0, %v1992
  %v2070 = vmul.f32 %v2069, %v2068
  %v2071 = vrot.slane %v1828, 2
  %v2073 = vmul.f32 %v1992, %v2071
  %v2074 = vadd.f32 %v2070, %v2073
  %v2076 = vrot.slane %v2074, 2
  %v2077 = vsel %vm366, %v2076, 0
  %2079 = vmatprep.subr.mxu0 0.0
  %2080 = vmatpush1.msra.mxu0 0.0
  %2081 = vmatprep.subr.mxu0 0.0
  %2082 = vmatpush1.msra.mxu0 0.0
  %2083 = vmatprep.subr.mxu0 0.0
  %2084 = vmatpush1.msra.mxu0 0.0
  %2085 = vmatprep.subr.mxu0 0.0
  %2086 = vmatpush1.msra.mxu0 0.0
  %2087 = vmatprep.subr.mxu0 0.0
  %2088 = vmatpush1.msra.mxu0 0.0
  %2089 = vmatprep.subr.mxu0 0.0
  %2090 = vmatpush1.msra.mxu0 0.0
  %2091 = vmatprep.subr.mxu0 0.0
  %2092 = vmatpush1.msra.mxu0 0.0
  %2093 = vmatprep.subr.mxu0 0.0
  %2094 = vmatpush1.msra.mxu0 0.0
  %2095 = vmatprep.subr.mxu0 0.0
  %2096 = vmatpush1.msra.mxu0 0.0
  %2097 = vmatprep.subr.mxu0 0.0
  %2098 = vmatpush1.msra.mxu0 0.0
  %2099 = vmatprep.subr.mxu0 0.0
  %2100 = vmatpush1.msra.mxu0 0.0
  %2101 = vmatprep.subr.mxu0 0.0
  %2102 = vmatpush1.msra.mxu0 0.0
  %2103 = vmatprep.subr.mxu0 0.0
  %2104 = vmatpush1.msra.mxu0 %v348
  %2105 = vmatprep.subr.mxu0 0.0
  %2106 = vmatpush1.msra.mxu0 %v347
  %2107 = vmatprep.subr.mxu0 0.0
  %2108 = vmatpush1.msra.mxu0 %v346
  %2109 = vmatprep.subr.mxu0 0.0
  %2110 = vmatpush1.msra.mxu0 %v345
  %2111 = vmatprep.subr.mxu0 0.0
  %2112 = vmatpush2.msra.mxu0 0.0
  %2113 = vmatprep.subr.mxu0 0.0
  %2114 = vmatpush2.msra.mxu0 0.0
  %2115 = vmatprep.subr.mxu0 0.0
  %2116 = vmatpush2.msra.mxu0 0.0
  %2117 = vmatprep.subr.mxu0 0.0
  %2118 = vmatpush2.msra.mxu0 0.0
  %2119 = vmatprep.subr.mxu0 0.0
  %2120 = vmatpush2.msra.mxu0 0.0
  %2121 = vmatprep.subr.mxu0 0.0
  %2122 = vmatpush2.msra.mxu0 0.0
  %2123 = vmatprep.subr.mxu0 0.0
  %2124 = vmatpush2.msra.mxu0 0.0
  %2125 = vmatprep.subr.mxu0 0.0
  %2126 = vmatpush2.msra.mxu0 0.0
  %2127 = vmatprep.subr.mxu0 0.0
  %2128 = vmatpush2.msra.mxu0 0.0
  %2129 = vmatprep.subr.mxu0 0.0
  %2130 = vmatpush2.msra.mxu0 0.0
  %2131 = vmatprep.subr.mxu0 0.0
  %2132 = vmatpush2.msra.mxu0 0.0
  %2133 = vmatprep.subr.mxu0 0.0
  %2134 = vmatpush2.msra.mxu0 0.0
  %2135 = vmatprep.subr.mxu0 0.0
  %2136 = vmatpush2.msra.mxu0 0.0
  %2137 = vmatprep.subr.mxu0 0.0
  %2138 = vmatpush2.msra.mxu0 0.0
  %2139 = vmatprep.subr.mxu0 0.0
  %2140 = vmatpush2.msra.mxu0 0.0
  %2141 = vmatprep.subr.mxu0 0.0
  %2142 = vmatpush2.msra.mxu0 0.0
  %2143 = vmatprep.mubr.f32.mxu0 0.0
  %2144 = vmatmul.mubr.f32.gmra.mxu0 %v2077
  %v2145 = vpop.f32.mrf.mxu0
  %v2146 = vadd.f32 0.0, %v2145
  %v2147 = vpop.f32.mrf.mxu0
  %2148 = vdwg.mxu0
  %2149 = vmatprep.subr.mxu0 0.0
  %2150 = vmatpush1.msra.mxu0 0.0
  %2151 = vmatprep.subr.mxu0 0.0
  %2152 = vmatpush1.msra.mxu0 0.0
  %2153 = vmatprep.subr.mxu0 0.0
  %2154 = vmatpush1.msra.mxu0 0.0
  %2155 = vmatprep.subr.mxu0 0.0
  %2156 = vmatpush1.msra.mxu0 0.0
  %2157 = vmatprep.subr.mxu0 0.0
  %2158 = vmatpush1.msra.mxu0 0.0
  %2159 = vmatprep.subr.mxu0 0.0
  %2160 = vmatpush1.msra.mxu0 0.0
  %2161 = vmatprep.subr.mxu0 0.0
  %2162 = vmatpush1.msra.mxu0 0.0
  %2163 = vmatprep.subr.mxu0 0.0
  %2164 = vmatpush1.msra.mxu0 0.0
  %2165 = vmatprep.subr.mxu0 0.0
  %2166 = vmatpush1.msra.mxu0 0.0
  %2167 = vmatprep.subr.mxu0 0.0
  %2168 = vmatpush1.msra.mxu0 0.0
  %2169 = vmatprep.subr.mxu0 0.0
  %2170 = vmatpush1.msra.mxu0 0.0
  %2171 = vmatprep.subr.mxu0 0.0
  %2172 = vmatpush1.msra.mxu0 0.0
  %2173 = vmatprep.subr.mxu0 0.0
  %2174 = vmatpush1.msra.mxu0 %v353
  %2175 = vmatprep.subr.mxu0 0.0
  %2176 = vmatpush1.msra.mxu0 %v352
  %2177 = vmatprep.subr.mxu0 0.0
  %2178 = vmatpush1.msra.mxu0 %v351
  %2179 = vmatprep.subr.mxu0 0.0
  %2180 = vmatpush1.msra.mxu0 %v350
  %2181 = vmatprep.subr.mxu0 0.0
  %2182 = vmatpush2.msra.mxu0 0.0
  %2183 = vmatprep.subr.mxu0 0.0
  %2184 = vmatpush2.msra.mxu0 0.0
  %2185 = vmatprep.subr.mxu0 0.0
  %2186 = vmatpush2.msra.mxu0 0.0
  %2187 = vmatprep.subr.mxu0 0.0
  %2188 = vmatpush2.msra.mxu0 0.0
  %2189 = vmatprep.subr.mxu0 0.0
  %2190 = vmatpush2.msra.mxu0 0.0
  %2191 = vmatprep.subr.mxu0 0.0
  %2192 = vmatpush2.msra.mxu0 0.0
  %2193 = vmatprep.subr.mxu0 0.0
  %2194 = vmatpush2.msra.mxu0 0.0
  %2195 = vmatprep.subr.mxu0 0.0
  %2196 = vmatpush2.msra.mxu0 0.0
  %2197 = vmatprep.subr.mxu0 0.0
  %2198 = vmatpush2.msra.mxu0 0.0
  %2199 = vmatprep.subr.mxu0 0.0
  %2200 = vmatpush2.msra.mxu0 0.0
  %2201 = vmatprep.subr.mxu0 0.0
  %2202 = vmatpush2.msra.mxu0 0.0
  %2203 = vmatprep.subr.mxu0 0.0
  %2204 = vmatpush2.msra.mxu0 0.0
  %2205 = vmatprep.subr.mxu0 0.0
  %2206 = vmatpush2.msra.mxu0 0.0
  %2207 = vmatprep.subr.mxu0 0.0
  %2208 = vmatpush2.msra.mxu0 0.0
  %2209 = vmatprep.subr.mxu0 0.0
  %2210 = vmatpush2.msra.mxu0 0.0
  %2211 = vmatprep.subr.mxu0 0.0
  %2212 = vmatpush2.msra.mxu0 0.0
  %2213 = vmatprep.mubr.f32.mxu0 0.0
  %2214 = vmatmul.mubr.f32.gmra.mxu0 %v2077
  %v2215 = vpop.f32.mrf.mxu0
  %v2216 = vadd.f32 0.0, %v2215
  %v2217 = vpop.f32.mrf.mxu0
  %2218 = vdwg.mxu0
  %v2219 = vadd.f32 %v155, %v2146
  %v2220 = vxor.u32 %v2219, 2147483648
  %v2221 = vmul.f32 %v2220, 1.442695
  %v2222 = vpow.pop %v2221
  %v2223 = vadd.f32 %v2222, 1.0
  %v2224 = vrcp.pop %v2223
  %v2225 = vmul.f32 1.0, %v2224
  %v2226 = vadd.f32 %v249, %v2216
  %v2227 = vxor.u32 %v2226, 2147483648
  %v2228 = vmul.f32 %v2227, 1.442695
  %v2229 = vpow.pop %v2228
  %v2230 = vadd.f32 %v2229, 1.0
  %v2231 = vrcp.pop %v2230
  %v2232 = vmul.f32 1.0, %v2231
  %2233 = vmatprep.subr.mxu0 0.0
  %2234 = vmatpush1.msra.mxu0 0.0
  %2235 = vmatprep.subr.mxu0 0.0
  %2236 = vmatpush1.msra.mxu0 0.0
  %2237 = vmatprep.subr.mxu0 0.0
  %2238 = vmatpush1.msra.mxu0 0.0
  %2239 = vmatprep.subr.mxu0 0.0
  %2240 = vmatpush1.msra.mxu0 0.0
  %2241 = vmatprep.subr.mxu0 0.0
  %2242 = vmatpush1.msra.mxu0 0.0
  %2243 = vmatprep.subr.mxu0 0.0
  %2244 = vmatpush1.msra.mxu0 0.0
  %2245 = vmatprep.subr.mxu0 0.0
  %2246 = vmatpush1.msra.mxu0 0.0
  %2247 = vmatprep.subr.mxu0 0.0
  %2248 = vmatpush1.msra.mxu0 0.0
  %2249 = vmatprep.subr.mxu0 0.0
  %2250 = vmatpush1.msra.mxu0 0.0
  %2251 = vmatprep.subr.mxu0 0.0
  %2252 = vmatpush1.msra.mxu0 0.0
  %2253 = vmatprep.subr.mxu0 0.0
  %2254 = vmatpush1.msra.mxu0 0.0
  %2255 = vmatprep.subr.mxu0 0.0
  %2256 = vmatpush1.msra.mxu0 0.0
  %2257 = vmatprep.subr.mxu0 0.0
  %2258 = vmatpush1.msra.mxu0 %v358
  %2259 = vmatprep.subr.mxu0 0.0
  %2260 = vmatpush1.msra.mxu0 %v357
  %2261 = vmatprep.subr.mxu0 0.0
  %2262 = vmatpush1.msra.mxu0 %v356
  %2263 = vmatprep.subr.mxu0 0.0
  %2264 = vmatpush1.msra.mxu0 %v355
  %2265 = vmatprep.subr.mxu0 0.0
  %2266 = vmatpush2.msra.mxu0 0.0
  %2267 = vmatprep.subr.mxu0 0.0
  %2268 = vmatpush2.msra.mxu0 0.0
  %2269 = vmatprep.subr.mxu0 0.0
  %2270 = vmatpush2.msra.mxu0 0.0
  %2271 = vmatprep.subr.mxu0 0.0
  %2272 = vmatpush2.msra.mxu0 0.0
  %2273 = vmatprep.subr.mxu0 0.0
  %2274 = vmatpush2.msra.mxu0 0.0
  %2275 = vmatprep.subr.mxu0 0.0
  %2276 = vmatpush2.msra.mxu0 0.0
  %2277 = vmatprep.subr.mxu0 0.0
  %2278 = vmatpush2.msra.mxu0 0.0
  %2279 = vmatprep.subr.mxu0 0.0
  %2280 = vmatpush2.msra.mxu0 0.0
  %2281 = vmatprep.subr.mxu0 0.0
  %2282 = vmatpush2.msra.mxu0 0.0
  %2283 = vmatprep.subr.mxu0 0.0
  %2284 = vmatpush2.msra.mxu0 0.0
  %2285 = vmatprep.subr.mxu0 0.0
  %2286 = vmatpush2.msra.mxu0 0.0
  %2287 = vmatprep.subr.mxu0 0.0
  %2288 = vmatpush2.msra.mxu0 0.0
  %2289 = vmatprep.subr.mxu0 0.0
  %2290 = vmatpush2.msra.mxu0 0.0
  %2291 = vmatprep.subr.mxu0 0.0
  %2292 = vmatpush2.msra.mxu0 0.0
  %2293 = vmatprep.subr.mxu0 0.0
  %2294 = vmatpush2.msra.mxu0 0.0
  %2295 = vmatprep.subr.mxu0 0.0
  %2296 = vmatpush2.msra.mxu0 0.0
  %2297 = vmatprep.mubr.f32.mxu0 0.0
  %2298 = vmatmul.mubr.f32.gmra.mxu0 %v2077
  %v2299 = vpop.f32.mrf.mxu0
  %v2300 = vadd.f32 %v364, %v2299
  %v2301 = vpop.f32.mrf.mxu0
  %2302 = vdwg.mxu0
  %v2303 = vmul.f32 %v2225, %v2300
  %v2304 = vadd.f32 %v343, %v2303
  %v2305 = vtanh.pop %v2304
  %v2306 = vsub.f32 1.0, %v2232
  %v2307 = vmul.f32 %v2306, %v2305
  %v2309 = vmul.f32 %v2232, %v2076
  %v2310 = vadd.f32 %v2307, %v2309
  %v2311 = vld [vmem:[%s7] sm:$0xff]
  %v2312 = vld [vmem:[%s7 + $0x8] sm:$0xff]
  %v2313 = vld [vmem:[%s7 + $0x10] sm:$0xff]
  %v2314 = vld [vmem:[%s7 + $0x18] sm:$0xff]
  %v2315 = vld [vmem:[%s8] sm:$0x1]
  %v2317 = vlaneseq
  %v2318 = vshrl.u32 %v2317, 7
  %v2319 = vsub.s32 0, %v2318
  %v2320 = vrot.slane %v2315, %v2319
  %v2323 = vsel %vm366, %v2310, 0
  %2325 = vmatprep.subr.mxu0 0.0
  %2326 = vmatpush1.msra.mxu0 0.0
  %2327 = vmatprep.subr.mxu0 0.0
  %2328 = vmatpush1.msra.mxu0 0.0
  %2329 = vmatprep.subr.mxu0 0.0
  %2330 = vmatpush1.msra.mxu0 0.0
  %2331 = vmatprep.subr.mxu0 0.0
  %2332 = vmatpush1.msra.mxu0 0.0
  %2333 = vmatprep.subr.mxu0 0.0
  %2334 = vmatpush1.msra.mxu0 0.0
  %2335 = vmatprep.subr.mxu0 0.0
  %2336 = vmatpush1.msra.mxu0 0.0
  %2337 = vmatprep.subr.mxu0 0.0
  %2338 = vmatpush1.msra.mxu0 0.0
  %2339 = vmatprep.subr.mxu0 0.0
  %2340 = vmatpush1.msra.mxu0 0.0
  %2341 = vmatprep.subr.mxu0 0.0
  %2342 = vmatpush1.msra.mxu0 0.0
  %2343 = vmatprep.subr.mxu0 0.0
  %2344 = vmatpush1.msra.mxu0 0.0
  %2345 = vmatprep.subr.mxu0 0.0
  %2346 = vmatpush1.msra.mxu0 0.0
  %2347 = vmatprep.subr.mxu0 0.0
  %2348 = vmatpush1.msra.mxu0 0.0
  %2349 = vmatprep.subr.mxu0 0.0
  %2350 = vmatpush1.msra.mxu0 %v2314
  %2351 = vmatprep.subr.mxu0 0.0
  %2352 = vmatpush1.msra.mxu0 %v2313
  %2353 = vmatprep.subr.mxu0 0.0
  %2354 = vmatpush1.msra.mxu0 %v2312
  %2355 = vmatprep.subr.mxu0 0.0
  %2356 = vmatpush1.msra.mxu0 %v2311
  %2357 = vmatprep.subr.mxu0 0.0
  %2358 = vmatpush2.msra.mxu0 0.0
  %2359 = vmatprep.subr.mxu0 0.0
  %2360 = vmatpush2.msra.mxu0 0.0
  %2361 = vmatprep.subr.mxu0 0.0
  %2362 = vmatpush2.msra.mxu0 0.0
  %2363 = vmatprep.subr.mxu0 0.0
  %2364 = vmatpush2.msra.mxu0 0.0
  %2365 = vmatprep.subr.mxu0 0.0
  %2366 = vmatpush2.msra.mxu0 0.0
  %2367 = vmatprep.subr.mxu0 0.0
  %2368 = vmatpush2.msra.mxu0 0.0
  %2369 = vmatprep.subr.mxu0 0.0
  %2370 = vmatpush2.msra.mxu0 0.0
  %2371 = vmatprep.subr.mxu0 0.0
  %2372 = vmatpush2.msra.mxu0 0.0
  %2373 = vmatprep.subr.mxu0 0.0
  %2374 = vmatpush2.msra.mxu0 0.0
  %2375 = vmatprep.subr.mxu0 0.0
  %2376 = vmatpush2.msra.mxu0 0.0
  %2377 = vmatprep.subr.mxu0 0.0
  %2378 = vmatpush2.msra.mxu0 0.0
  %2379 = vmatprep.subr.mxu0 0.0
  %2380 = vmatpush2.msra.mxu0 0.0
  %2381 = vmatprep.subr.mxu0 0.0
  %2382 = vmatpush2.msra.mxu0 0.0
  %2383 = vmatprep.subr.mxu0 0.0
  %2384 = vmatpush2.msra.mxu0 0.0
  %2385 = vmatprep.subr.mxu0 0.0
  %2386 = vmatpush2.msra.mxu0 0.0
  %2387 = vmatprep.subr.mxu0 0.0
  %2388 = vmatpush2.msra.mxu0 0.0
  %2389 = vmatprep.mubr.f32.mxu0 0.0
  %2390 = vmatmul.mubr.f32.gmra.mxu0 %v2323
  %v2391 = vpop.f32.mrf.mxu0
  %v2392 = vadd.f32 %v2320, %v2391
  %v2393 = vpop.f32.mrf.mxu0
  %2394 = vdwg.mxu0
  %vm2395 = vcmask 123904
  %2396 = vst.msk [vmem:[%s9] sm:$0x3] %vm2395, %v2392
  // Predicated region
  $region38: #{rnn_encoder_forward.1} parent=0 // pred_check
    _
  $region39: #{rnn_encoder_forward.1} parent=0 // pred_check_branch
    %2398 = sbr.rel (0) target = $region41
  $region40: #{rnn_encoder_forward.1} parent=0 // pred_region
    _
  $region41: #{rnn_encoder_forward.1} parent=0 // pred_fallthru
    _
  // Predicated region
  $region42: #{rnn_encoder_forward.1} parent=0 // pred_check
    _
  $region43: #{rnn_encoder_forward.1} parent=0 // pred_check_branch
    %2400 = sbr.rel (0) target = $region45
  $region44: #{rnn_encoder_forward.1} parent=0 // pred_region
    _
  $region45: #{rnn_encoder_forward.1} parent=0 // pred_fallthru
    _

</llo_original>
